<compile_context>
chip_gen: v6e
topology: v6e:2x2x1
jax: 0.10.0
libtpu: 0.0.40
codegen_flags: <defaults>
</compile_context>

<pallas_src>
import functools

import jax
import jax.numpy as jnp
from jax import lax
from jax.experimental import pallas as pl
from jax.experimental.pallas import tpu as pltpu


# ----------------------------- Pallas kernel ------------------------------ #
def lstm_predictor_kernel(x_ref, wih_ref, whh_ref, b_ref, wout_ref, bout_ref,
                          out_ref, *, T, B, H):
    """Single invocation: hoisted input projection + unrolled LSTM recurrence + head."""
    # Hoisted input projection: one (T*B, E) @ (E, 4H) bf16 MXU matmul, f32 accumulate.
    pre = (jnp.dot(x_ref[...], wih_ref[...], preferred_element_type=jnp.float32)
           + b_ref[...])                                   # (T*B, 4H) f32

    whh = whh_ref[...]                                     # (H, 4H) bf16, loaded once

    h = jnp.zeros((B, H), jnp.float32)
    c = jnp.zeros((B, H), jnp.float32)

    # Fully unrolled recurrence; only h @ W_hh^T remains on the serialized chain.
    for t in range(T):
        pre_t = pre[t * B:(t + 1) * B, :]                  # (B, 4H), sublane-aligned
        gates = pre_t + jnp.dot(h.astype(jnp.bfloat16), whh,
                                preferred_element_type=jnp.float32)
        i = jax.nn.sigmoid(gates[:, 0 * H:1 * H])          # gate math stays f32
        f = jax.nn.sigmoid(gates[:, 1 * H:2 * H])
        g = jnp.tanh(gates[:, 2 * H:3 * H])
        o = jax.nn.sigmoid(gates[:, 3 * H:4 * H])
        c = f * c + i * g
        h = o * jnp.tanh(c)

    # Linear(H, 1) head on the last hidden state: VPU multiply + lane reduce.
    out_ref[...] = (jnp.sum(h * wout_ref[...], axis=-1, keepdims=True)
                    + bout_ref[...])


# ------------------------------- Wrapper ----------------------------------- #
def lstm_predictor_forward(tokens, params):
    """tokens: (B, T) int32 token ids. Returns prediction of shape (B, 1) float32."""
    emb_table = params["embedding"]                        # (V, E)
    # Embedding lookup is a gather -> plain-JAX glue.
    x = jnp.take(emb_table, tokens, axis=0)                # (B, T, E)
    # input_dropout with rate 0.0 is the identity.

    B, T, E = x.shape
    H = params["w_hh"].shape[1]                            # w_hh: (4H, H)

    # Time-major, flattened so the hoisted input projection is one matmul.
    x_flat = jnp.transpose(x, (1, 0, 2)).reshape(T * B, E).astype(jnp.bfloat16)

    wih = params["w_ih"].T.astype(jnp.bfloat16)            # (E, 4H)
    whh = params["w_hh"].T.astype(jnp.bfloat16)            # (H, 4H)
    b = (params["b_ih"] + params["b_hh"]).reshape(1, 4 * H).astype(jnp.float32)
    wout = params["w_out"].reshape(1, H).astype(jnp.float32)   # (1, H) row
    bout = params["b_out"].reshape(1, 1).astype(jnp.float32)   # (1, 1)

    vmem_spec = pl.BlockSpec(memory_space=pltpu.MemorySpace.VMEM)  # full-array, resident
    return pl.pallas_call(
        functools.partial(lstm_predictor_kernel, T=T, B=B, H=H),
        out_shape=jax.ShapeDtypeStruct((B, 1), jnp.float32),
        in_specs=[vmem_spec] * 6,
        out_specs=vmem_spec,
    )(x_flat, wih, whh, b, wout, bout)


# --------------------------- Pure-JAX reference ----------------------------- #
def lstm_predictor_reference(tokens, params):
    """Mirrors the kernel's numerics (bf16 matmul operands, f32 accumulation/gates)."""
    x = jnp.take(params["embedding"], tokens, axis=0)      # (B, T, E)
    B, T, E = x.shape
    H = params["w_hh"].shape[1]

    wih = params["w_ih"].T.astype(jnp.bfloat16)            # (E, 4H)
    whh = params["w_hh"].T.astype(jnp.bfloat16)            # (H, 4H)
    b = (params["b_ih"] + params["b_hh"]).astype(jnp.float32)

    x_flat = jnp.transpose(x, (1, 0, 2)).reshape(T * B, E).astype(jnp.bfloat16)
    pre = (jnp.dot(x_flat, wih, preferred_element_type=jnp.float32)
           + b).reshape(T, B, 4 * H)

    def step(carry, pre_t):
        h, c = carry
        gates = pre_t + jnp.dot(h.astype(jnp.bfloat16), whh,
                                preferred_element_type=jnp.float32)
        i = jax.nn.sigmoid(gates[:, 0 * H:1 * H])
        f = jax.nn.sigmoid(gates[:, 1 * H:2 * H])
        g = jnp.tanh(gates[:, 2 * H:3 * H])
        o = jax.nn.sigmoid(gates[:, 3 * H:4 * H])
        c_new = f * c + i * g
        h_new = o * jnp.tanh(c_new)
        return (h_new, c_new), None

    h0 = jnp.zeros((B, H), jnp.float32)
    c0 = jnp.zeros((B, H), jnp.float32)
    (h_T, _), _ = lax.scan(step, (h0, c0), pre)
    return (jnp.sum(h_T * params["w_out"].reshape(1, H), axis=-1, keepdims=True)
            + params["b_out"].reshape(1, 1))


# ------------------------------ Param init ---------------------------------- #
def init_params(key, V, E, H):
    ks = jax.random.split(key, 7)
    k = 1.0 / jnp.sqrt(H)
    u = lambda kk, shape: jax.random.uniform(kk, shape, jnp.float32, -k, k)
    return {
        "embedding": jax.random.normal(ks[0], (V, E), jnp.float32),  # nn.Embedding ~ N(0,1)
        "w_ih": u(ks[1], (4 * H, E)),
        "w_hh": u(ks[2], (4 * H, H)),
        "b_ih": u(ks[3], (4 * H,)),
        "b_hh": u(ks[4], (4 * H,)),
        "w_out": u(ks[5], (1, H)),
        "b_out": u(ks[6], (1,)),
    }


if __name__ == "__main__":
    # Small, lane-friendly shapes consistent with the module's forward.
    V, E, H = 200, 128, 128
    B, T = 8, 8

    key = jax.random.PRNGKey(0)
    kp, kt = jax.random.split(key)
    params = init_params(kp, V, E, H)
    tokens = jax.random.randint(kt, (B, T), 0, V, dtype=jnp.int32)

    pred = jax.block_until_ready(jax.jit(lstm_predictor_forward)(tokens, params))
    ref = jax.block_until_ready(lstm_predictor_reference(tokens, params))

    assert pred.shape == (B, 1)
    # bf16 matmul operands -> relaxed tolerance vs the (numerically mirrored) reference.
    assert jnp.allclose(pred, ref, rtol=1e-2, atol=1e-2), (pred, ref)
    print("KERNEL_OK")
</pallas_src>

<mosaic_0001>
module attributes {stable_mosaic.version = 11 : i64} {
  func.func @lstm_predictor_kernel(%arg0: memref<64x128xbf16, #tpu.memory_space<vmem>>, %arg1: memref<128x512xbf16, #tpu.memory_space<vmem>>, %arg2: memref<128x512xbf16, #tpu.memory_space<vmem>>, %arg3: memref<1x512xf32, #tpu.memory_space<vmem>>, %arg4: memref<1x128xf32, #tpu.memory_space<vmem>>, %arg5: memref<1x1xf32, #tpu.memory_space<vmem>>, %arg6: memref<8x1xf32, #tpu.memory_space<vmem>>) attributes {dimension_semantics = [], scalar_prefetch = 0 : i64, scratch_operands = 0 : i64, tpu.core_type = #tpu.core_type<tc>} {
    %c0 = arith.constant 0 : index
    %c0_0 = arith.constant 0 : index
    %0 = vector.load %arg0[%c0, %c0_0] : memref<64x128xbf16, #tpu.memory_space<vmem>>, vector<64x128xbf16>
    %c0_1 = arith.constant 0 : index
    %c0_2 = arith.constant 0 : index
    %1 = vector.load %arg1[%c0_1, %c0_2] : memref<128x512xbf16, #tpu.memory_space<vmem>>, vector<128x512xbf16>
    %cst = arith.constant dense<0.000000e+00> : vector<64x512xf32>
    %2 = tpu.matmul %0, %1, %cst {dimension_numbers = #tpu.dot_dimension_numbers<[1], [0], [0], [1], [0, 0, 1, 1], [], []>} : vector<64x128xbf16>, vector<128x512xbf16>, vector<64x512xf32> -> vector<64x512xf32>
    %c0_3 = arith.constant 0 : index
    %c0_4 = arith.constant 0 : index
    %3 = vector.load %arg3[%c0_3, %c0_4] : memref<1x512xf32, #tpu.memory_space<vmem>>, vector<1x512xf32>
    %4 = vector.broadcast %3 : vector<1x512xf32> to vector<64x512xf32>
    %5 = arith.addf %2, %4 : vector<64x512xf32>
    %c0_5 = arith.constant 0 : index
    %c0_6 = arith.constant 0 : index
    %6 = vector.load %arg2[%c0_5, %c0_6] : memref<128x512xbf16, #tpu.memory_space<vmem>>, vector<128x512xbf16>
    %cst_7 = arith.constant 0.000000e+00 : f32
    %7 = vector.broadcast %cst_7 : f32 to vector<8x128xf32>
    %cst_8 = arith.constant 0.000000e+00 : f32
    %8 = vector.broadcast %cst_8 : f32 to vector<8x128xf32>
    %9 = vector.extract_strided_slice %5 {offsets = [0, 0], sizes = [8, 512], strides = [1, 1]} : vector<64x512xf32> to vector<8x512xf32>
    %10 = arith.truncf %7 : vector<8x128xf32> to vector<8x128xbf16>
    %cst_9 = arith.constant dense<0.000000e+00> : vector<8x512xf32>
    %11 = tpu.matmul %10, %6, %cst_9 {dimension_numbers = #tpu.dot_dimension_numbers<[1], [0], [0], [1], [0, 0, 1, 1], [], []>} : vector<8x128xbf16>, vector<128x512xbf16>, vector<8x512xf32> -> vector<8x512xf32>
    %12 = arith.addf %9, %11 : vector<8x512xf32>
    %13 = vector.extract_strided_slice %12 {offsets = [0, 0], sizes = [8, 128], strides = [1, 1]} : vector<8x512xf32> to vector<8x128xf32>
    %14 = arith.negf %13 : vector<8x128xf32>
    %15 = math.exp %14 : vector<8x128xf32>
    %cst_10 = arith.constant 1.000000e+00 : f32
    %16 = vector.broadcast %cst_10 : f32 to vector<8x128xf32>
    %17 = arith.addf %16, %15 : vector<8x128xf32>
    %18 = arith.divf %16, %17 : vector<8x128xf32>
    %19 = vector.extract_strided_slice %12 {offsets = [0, 128], sizes = [8, 128], strides = [1, 1]} : vector<8x512xf32> to vector<8x128xf32>
    %20 = arith.negf %19 : vector<8x128xf32>
    %21 = math.exp %20 : vector<8x128xf32>
    %cst_11 = arith.constant 1.000000e+00 : f32
    %22 = vector.broadcast %cst_11 : f32 to vector<8x128xf32>
    %23 = arith.addf %22, %21 : vector<8x128xf32>
    %24 = arith.divf %22, %23 : vector<8x128xf32>
    %25 = vector.extract_strided_slice %12 {offsets = [0, 256], sizes = [8, 128], strides = [1, 1]} : vector<8x512xf32> to vector<8x128xf32>
    %26 = math.tanh %25 : vector<8x128xf32>
    %27 = vector.extract_strided_slice %12 {offsets = [0, 384], sizes = [8, 128], strides = [1, 1]} : vector<8x512xf32> to vector<8x128xf32>
    %28 = arith.negf %27 : vector<8x128xf32>
    %29 = math.exp %28 : vector<8x128xf32>
    %cst_12 = arith.constant 1.000000e+00 : f32
    %30 = vector.broadcast %cst_12 : f32 to vector<8x128xf32>
    %31 = arith.addf %30, %29 : vector<8x128xf32>
    %32 = arith.divf %30, %31 : vector<8x128xf32>
    %33 = arith.mulf %24, %8 : vector<8x128xf32>
    %34 = arith.mulf %18, %26 : vector<8x128xf32>
    %35 = arith.addf %33, %34 : vector<8x128xf32>
    %36 = math.tanh %35 : vector<8x128xf32>
    %37 = arith.mulf %32, %36 : vector<8x128xf32>
    %38 = vector.extract_strided_slice %5 {offsets = [8, 0], sizes = [8, 512], strides = [1, 1]} : vector<64x512xf32> to vector<8x512xf32>
    %39 = arith.truncf %37 : vector<8x128xf32> to vector<8x128xbf16>
    %cst_13 = arith.constant dense<0.000000e+00> : vector<8x512xf32>
    %40 = tpu.matmul %39, %6, %cst_13 {dimension_numbers = #tpu.dot_dimension_numbers<[1], [0], [0], [1], [0, 0, 1, 1], [], []>} : vector<8x128xbf16>, vector<128x512xbf16>, vector<8x512xf32> -> vector<8x512xf32>
    %41 = arith.addf %38, %40 : vector<8x512xf32>
    %42 = vector.extract_strided_slice %41 {offsets = [0, 0], sizes = [8, 128], strides = [1, 1]} : vector<8x512xf32> to vector<8x128xf32>
    %43 = arith.negf %42 : vector<8x128xf32>
    %44 = math.exp %43 : vector<8x128xf32>
    %cst_14 = arith.constant 1.000000e+00 : f32
    %45 = vector.broadcast %cst_14 : f32 to vector<8x128xf32>
    %46 = arith.addf %45, %44 : vector<8x128xf32>
    %47 = arith.divf %45, %46 : vector<8x128xf32>
    %48 = vector.extract_strided_slice %41 {offsets = [0, 128], sizes = [8, 128], strides = [1, 1]} : vector<8x512xf32> to vector<8x128xf32>
    %49 = arith.negf %48 : vector<8x128xf32>
    %50 = math.exp %49 : vector<8x128xf32>
    %cst_15 = arith.constant 1.000000e+00 : f32
    %51 = vector.broadcast %cst_15 : f32 to vector<8x128xf32>
    %52 = arith.addf %51, %50 : vector<8x128xf32>
    %53 = arith.divf %51, %52 : vector<8x128xf32>
    %54 = vector.extract_strided_slice %41 {offsets = [0, 256], sizes = [8, 128], strides = [1, 1]} : vector<8x512xf32> to vector<8x128xf32>
    %55 = math.tanh %54 : vector<8x128xf32>
    %56 = vector.extract_strided_slice %41 {offsets = [0, 384], sizes = [8, 128], strides = [1, 1]} : vector<8x512xf32> to vector<8x128xf32>
    %57 = arith.negf %56 : vector<8x128xf32>
    %58 = math.exp %57 : vector<8x128xf32>
    %cst_16 = arith.constant 1.000000e+00 : f32
    %59 = vector.broadcast %cst_16 : f32 to vector<8x128xf32>
    %60 = arith.addf %59, %58 : vector<8x128xf32>
    %61 = arith.divf %59, %60 : vector<8x128xf32>
    %62 = arith.mulf %53, %35 : vector<8x128xf32>
    %63 = arith.mulf %47, %55 : vector<8x128xf32>
    %64 = arith.addf %62, %63 : vector<8x128xf32>
    %65 = math.tanh %64 : vector<8x128xf32>
    %66 = arith.mulf %61, %65 : vector<8x128xf32>
    %67 = vector.extract_strided_slice %5 {offsets = [16, 0], sizes = [8, 512], strides = [1, 1]} : vector<64x512xf32> to vector<8x512xf32>
    %68 = arith.truncf %66 : vector<8x128xf32> to vector<8x128xbf16>
    %cst_17 = arith.constant dense<0.000000e+00> : vector<8x512xf32>
    %69 = tpu.matmul %68, %6, %cst_17 {dimension_numbers = #tpu.dot_dimension_numbers<[1], [0], [0], [1], [0, 0, 1, 1], [], []>} : vector<8x128xbf16>, vector<128x512xbf16>, vector<8x512xf32> -> vector<8x512xf32>
    %70 = arith.addf %67, %69 : vector<8x512xf32>
    %71 = vector.extract_strided_slice %70 {offsets = [0, 0], sizes = [8, 128], strides = [1, 1]} : vector<8x512xf32> to vector<8x128xf32>
    %72 = arith.negf %71 : vector<8x128xf32>
    %73 = math.exp %72 : vector<8x128xf32>
    %cst_18 = arith.constant 1.000000e+00 : f32
    %74 = vector.broadcast %cst_18 : f32 to vector<8x128xf32>
    %75 = arith.addf %74, %73 : vector<8x128xf32>
    %76 = arith.divf %74, %75 : vector<8x128xf32>
    %77 = vector.extract_strided_slice %70 {offsets = [0, 128], sizes = [8, 128], strides = [1, 1]} : vector<8x512xf32> to vector<8x128xf32>
    %78 = arith.negf %77 : vector<8x128xf32>
    %79 = math.exp %78 : vector<8x128xf32>
    %cst_19 = arith.constant 1.000000e+00 : f32
    %80 = vector.broadcast %cst_19 : f32 to vector<8x128xf32>
    %81 = arith.addf %80, %79 : vector<8x128xf32>
    %82 = arith.divf %80, %81 : vector<8x128xf32>
    %83 = vector.extract_strided_slice %70 {offsets = [0, 256], sizes = [8, 128], strides = [1, 1]} : vector<8x512xf32> to vector<8x128xf32>
    %84 = math.tanh %83 : vector<8x128xf32>
    %85 = vector.extract_strided_slice %70 {offsets = [0, 384], sizes = [8, 128], strides = [1, 1]} : vector<8x512xf32> to vector<8x128xf32>
    %86 = arith.negf %85 : vector<8x128xf32>
    %87 = math.exp %86 : vector<8x128xf32>
    %cst_20 = arith.constant 1.000000e+00 : f32
    %88 = vector.broadcast %cst_20 : f32 to vector<8x128xf32>
    %89 = arith.addf %88, %87 : vector<8x128xf32>
    %90 = arith.divf %88, %89 : vector<8x128xf32>
    %91 = arith.mulf %82, %64 : vector<8x128xf32>
    %92 = arith.mulf %76, %84 : vector<8x128xf32>
    %93 = arith.addf %91, %92 : vector<8x128xf32>
    %94 = math.tanh %93 : vector<8x128xf32>
    %95 = arith.mulf %90, %94 : vector<8x128xf32>
    %96 = vector.extract_strided_slice %5 {offsets = [24, 0], sizes = [8, 512], strides = [1, 1]} : vector<64x512xf32> to vector<8x512xf32>
    %97 = arith.truncf %95 : vector<8x128xf32> to vector<8x128xbf16>
    %cst_21 = arith.constant dense<0.000000e+00> : vector<8x512xf32>
    %98 = tpu.matmul %97, %6, %cst_21 {dimension_numbers = #tpu.dot_dimension_numbers<[1], [0], [0], [1], [0, 0, 1, 1], [], []>} : vector<8x128xbf16>, vector<128x512xbf16>, vector<8x512xf32> -> vector<8x512xf32>
    %99 = arith.addf %96, %98 : vector<8x512xf32>
    %100 = vector.extract_strided_slice %99 {offsets = [0, 0], sizes = [8, 128], strides = [1, 1]} : vector<8x512xf32> to vector<8x128xf32>
    %101 = arith.negf %100 : vector<8x128xf32>
    %102 = math.exp %101 : vector<8x128xf32>
    %cst_22 = arith.constant 1.000000e+00 : f32
    %103 = vector.broadcast %cst_22 : f32 to vector<8x128xf32>
    %104 = arith.addf %103, %102 : vector<8x128xf32>
    %105 = arith.divf %103, %104 : vector<8x128xf32>
    %106 = vector.extract_strided_slice %99 {offsets = [0, 128], sizes = [8, 128], strides = [1, 1]} : vector<8x512xf32> to vector<8x128xf32>
    %107 = arith.negf %106 : vector<8x128xf32>
    %108 = math.exp %107 : vector<8x128xf32>
    %cst_23 = arith.constant 1.000000e+00 : f32
    %109 = vector.broadcast %cst_23 : f32 to vector<8x128xf32>
    %110 = arith.addf %109, %108 : vector<8x128xf32>
    %111 = arith.divf %109, %110 : vector<8x128xf32>
    %112 = vector.extract_strided_slice %99 {offsets = [0, 256], sizes = [8, 128], strides = [1, 1]} : vector<8x512xf32> to vector<8x128xf32>
    %113 = math.tanh %112 : vector<8x128xf32>
    %114 = vector.extract_strided_slice %99 {offsets = [0, 384], sizes = [8, 128], strides = [1, 1]} : vector<8x512xf32> to vector<8x128xf32>
    %115 = arith.negf %114 : vector<8x128xf32>
    %116 = math.exp %115 : vector<8x128xf32>
    %cst_24 = arith.constant 1.000000e+00 : f32
    %117 = vector.broadcast %cst_24 : f32 to vector<8x128xf32>
    %118 = arith.addf %117, %116 : vector<8x128xf32>
    %119 = arith.divf %117, %118 : vector<8x128xf32>
    %120 = arith.mulf %111, %93 : vector<8x128xf32>
    %121 = arith.mulf %105, %113 : vector<8x128xf32>
    %122 = arith.addf %120, %121 : vector<8x128xf32>
    %123 = math.tanh %122 : vector<8x128xf32>
    %124 = arith.mulf %119, %123 : vector<8x128xf32>
    %125 = vector.extract_strided_slice %5 {offsets = [32, 0], sizes = [8, 512], strides = [1, 1]} : vector<64x512xf32> to vector<8x512xf32>
    %126 = arith.truncf %124 : vector<8x128xf32> to vector<8x128xbf16>
    %cst_25 = arith.constant dense<0.000000e+00> : vector<8x512xf32>
    %127 = tpu.matmul %126, %6, %cst_25 {dimension_numbers = #tpu.dot_dimension_numbers<[1], [0], [0], [1], [0, 0, 1, 1], [], []>} : vector<8x128xbf16>, vector<128x512xbf16>, vector<8x512xf32> -> vector<8x512xf32>
    %128 = arith.addf %125, %127 : vector<8x512xf32>
    %129 = vector.extract_strided_slice %128 {offsets = [0, 0], sizes = [8, 128], strides = [1, 1]} : vector<8x512xf32> to vector<8x128xf32>
    %130 = arith.negf %129 : vector<8x128xf32>
    %131 = math.exp %130 : vector<8x128xf32>
    %cst_26 = arith.constant 1.000000e+00 : f32
    %132 = vector.broadcast %cst_26 : f32 to vector<8x128xf32>
    %133 = arith.addf %132, %131 : vector<8x128xf32>
    %134 = arith.divf %132, %133 : vector<8x128xf32>
    %135 = vector.extract_strided_slice %128 {offsets = [0, 128], sizes = [8, 128], strides = [1, 1]} : vector<8x512xf32> to vector<8x128xf32>
    %136 = arith.negf %135 : vector<8x128xf32>
    %137 = math.exp %136 : vector<8x128xf32>
    %cst_27 = arith.constant 1.000000e+00 : f32
    %138 = vector.broadcast %cst_27 : f32 to vector<8x128xf32>
    %139 = arith.addf %138, %137 : vector<8x128xf32>
    %140 = arith.divf %138, %139 : vector<8x128xf32>
    %141 = vector.extract_strided_slice %128 {offsets = [0, 256], sizes = [8, 128], strides = [1, 1]} : vector<8x512xf32> to vector<8x128xf32>
    %142 = math.tanh %141 : vector<8x128xf32>
    %143 = vector.extract_strided_slice %128 {offsets = [0, 384], sizes = [8, 128], strides = [1, 1]} : vector<8x512xf32> to vector<8x128xf32>
    %144 = arith.negf %143 : vector<8x128xf32>
    %145 = math.exp %144 : vector<8x128xf32>
    %cst_28 = arith.constant 1.000000e+00 : f32
    %146 = vector.broadcast %cst_28 : f32 to vector<8x128xf32>
    %147 = arith.addf %146, %145 : vector<8x128xf32>
    %148 = arith.divf %146, %147 : vector<8x128xf32>
    %149 = arith.mulf %140, %122 : vector<8x128xf32>
    %150 = arith.mulf %134, %142 : vector<8x128xf32>
    %151 = arith.addf %149, %150 : vector<8x128xf32>
    %152 = math.tanh %151 : vector<8x128xf32>
    %153 = arith.mulf %148, %152 : vector<8x128xf32>
    %154 = vector.extract_strided_slice %5 {offsets = [40, 0], sizes = [8, 512], strides = [1, 1]} : vector<64x512xf32> to vector<8x512xf32>
    %155 = arith.truncf %153 : vector<8x128xf32> to vector<8x128xbf16>
    %cst_29 = arith.constant dense<0.000000e+00> : vector<8x512xf32>
    %156 = tpu.matmul %155, %6, %cst_29 {dimension_numbers = #tpu.dot_dimension_numbers<[1], [0], [0], [1], [0, 0, 1, 1], [], []>} : vector<8x128xbf16>, vector<128x512xbf16>, vector<8x512xf32> -> vector<8x512xf32>
    %157 = arith.addf %154, %156 : vector<8x512xf32>
    %158 = vector.extract_strided_slice %157 {offsets = [0, 0], sizes = [8, 128], strides = [1, 1]} : vector<8x512xf32> to vector<8x128xf32>
    %159 = arith.negf %158 : vector<8x128xf32>
    %160 = math.exp %159 : vector<8x128xf32>
    %cst_30 = arith.constant 1.000000e+00 : f32
    %161 = vector.broadcast %cst_30 : f32 to vector<8x128xf32>
    %162 = arith.addf %161, %160 : vector<8x128xf32>
    %163 = arith.divf %161, %162 : vector<8x128xf32>
    %164 = vector.extract_strided_slice %157 {offsets = [0, 128], sizes = [8, 128], strides = [1, 1]} : vector<8x512xf32> to vector<8x128xf32>
    %165 = arith.negf %164 : vector<8x128xf32>
    %166 = math.exp %165 : vector<8x128xf32>
    %cst_31 = arith.constant 1.000000e+00 : f32
    %167 = vector.broadcast %cst_31 : f32 to vector<8x128xf32>
    %168 = arith.addf %167, %166 : vector<8x128xf32>
    %169 = arith.divf %167, %168 : vector<8x128xf32>
    %170 = vector.extract_strided_slice %157 {offsets = [0, 256], sizes = [8, 128], strides = [1, 1]} : vector<8x512xf32> to vector<8x128xf32>
    %171 = math.tanh %170 : vector<8x128xf32>
    %172 = vector.extract_strided_slice %157 {offsets = [0, 384], sizes = [8, 128], strides = [1, 1]} : vector<8x512xf32> to vector<8x128xf32>
    %173 = arith.negf %172 : vector<8x128xf32>
    %174 = math.exp %173 : vector<8x128xf32>
    %cst_32 = arith.constant 1.000000e+00 : f32
    %175 = vector.broadcast %cst_32 : f32 to vector<8x128xf32>
    %176 = arith.addf %175, %174 : vector<8x128xf32>
    %177 = arith.divf %175, %176 : vector<8x128xf32>
    %178 = arith.mulf %169, %151 : vector<8x128xf32>
    %179 = arith.mulf %163, %171 : vector<8x128xf32>
    %180 = arith.addf %178, %179 : vector<8x128xf32>
    %181 = math.tanh %180 : vector<8x128xf32>
    %182 = arith.mulf %177, %181 : vector<8x128xf32>
    %183 = vector.extract_strided_slice %5 {offsets = [48, 0], sizes = [8, 512], strides = [1, 1]} : vector<64x512xf32> to vector<8x512xf32>
    %184 = arith.truncf %182 : vector<8x128xf32> to vector<8x128xbf16>
    %cst_33 = arith.constant dense<0.000000e+00> : vector<8x512xf32>
    %185 = tpu.matmul %184, %6, %cst_33 {dimension_numbers = #tpu.dot_dimension_numbers<[1], [0], [0], [1], [0, 0, 1, 1], [], []>} : vector<8x128xbf16>, vector<128x512xbf16>, vector<8x512xf32> -> vector<8x512xf32>
    %186 = arith.addf %183, %185 : vector<8x512xf32>
    %187 = vector.extract_strided_slice %186 {offsets = [0, 0], sizes = [8, 128], strides = [1, 1]} : vector<8x512xf32> to vector<8x128xf32>
    %188 = arith.negf %187 : vector<8x128xf32>
    %189 = math.exp %188 : vector<8x128xf32>
    %cst_34 = arith.constant 1.000000e+00 : f32
    %190 = vector.broadcast %cst_34 : f32 to vector<8x128xf32>
    %191 = arith.addf %190, %189 : vector<8x128xf32>
    %192 = arith.divf %190, %191 : vector<8x128xf32>
    %193 = vector.extract_strided_slice %186 {offsets = [0, 128], sizes = [8, 128], strides = [1, 1]} : vector<8x512xf32> to vector<8x128xf32>
    %194 = arith.negf %193 : vector<8x128xf32>
    %195 = math.exp %194 : vector<8x128xf32>
    %cst_35 = arith.constant 1.000000e+00 : f32
    %196 = vector.broadcast %cst_35 : f32 to vector<8x128xf32>
    %197 = arith.addf %196, %195 : vector<8x128xf32>
    %198 = arith.divf %196, %197 : vector<8x128xf32>
    %199 = vector.extract_strided_slice %186 {offsets = [0, 256], sizes = [8, 128], strides = [1, 1]} : vector<8x512xf32> to vector<8x128xf32>
    %200 = math.tanh %199 : vector<8x128xf32>
    %201 = vector.extract_strided_slice %186 {offsets = [0, 384], sizes = [8, 128], strides = [1, 1]} : vector<8x512xf32> to vector<8x128xf32>
    %202 = arith.negf %201 : vector<8x128xf32>
    %203 = math.exp %202 : vector<8x128xf32>
    %cst_36 = arith.constant 1.000000e+00 : f32
    %204 = vector.broadcast %cst_36 : f32 to vector<8x128xf32>
    %205 = arith.addf %204, %203 : vector<8x128xf32>
    %206 = arith.divf %204, %205 : vector<8x128xf32>
    %207 = arith.mulf %198, %180 : vector<8x128xf32>
    %208 = arith.mulf %192, %200 : vector<8x128xf32>
    %209 = arith.addf %207, %208 : vector<8x128xf32>
    %210 = math.tanh %209 : vector<8x128xf32>
    %211 = arith.mulf %206, %210 : vector<8x128xf32>
    %212 = vector.extract_strided_slice %5 {offsets = [56, 0], sizes = [8, 512], strides = [1, 1]} : vector<64x512xf32> to vector<8x512xf32>
    %213 = arith.truncf %211 : vector<8x128xf32> to vector<8x128xbf16>
    %cst_37 = arith.constant dense<0.000000e+00> : vector<8x512xf32>
    %214 = tpu.matmul %213, %6, %cst_37 {dimension_numbers = #tpu.dot_dimension_numbers<[1], [0], [0], [1], [0, 0, 1, 1], [], []>} : vector<8x128xbf16>, vector<128x512xbf16>, vector<8x512xf32> -> vector<8x512xf32>
    %215 = arith.addf %212, %214 : vector<8x512xf32>
    %216 = vector.extract_strided_slice %215 {offsets = [0, 0], sizes = [8, 128], strides = [1, 1]} : vector<8x512xf32> to vector<8x128xf32>
    %217 = arith.negf %216 : vector<8x128xf32>
    %218 = math.exp %217 : vector<8x128xf32>
    %cst_38 = arith.constant 1.000000e+00 : f32
    %219 = vector.broadcast %cst_38 : f32 to vector<8x128xf32>
    %220 = arith.addf %219, %218 : vector<8x128xf32>
    %221 = arith.divf %219, %220 : vector<8x128xf32>
    %222 = vector.extract_strided_slice %215 {offsets = [0, 128], sizes = [8, 128], strides = [1, 1]} : vector<8x512xf32> to vector<8x128xf32>
    %223 = arith.negf %222 : vector<8x128xf32>
    %224 = math.exp %223 : vector<8x128xf32>
    %cst_39 = arith.constant 1.000000e+00 : f32
    %225 = vector.broadcast %cst_39 : f32 to vector<8x128xf32>
    %226 = arith.addf %225, %224 : vector<8x128xf32>
    %227 = arith.divf %225, %226 : vector<8x128xf32>
    %228 = vector.extract_strided_slice %215 {offsets = [0, 256], sizes = [8, 128], strides = [1, 1]} : vector<8x512xf32> to vector<8x128xf32>
    %229 = math.tanh %228 : vector<8x128xf32>
    %230 = vector.extract_strided_slice %215 {offsets = [0, 384], sizes = [8, 128], strides = [1, 1]} : vector<8x512xf32> to vector<8x128xf32>
    %231 = arith.negf %230 : vector<8x128xf32>
    %232 = math.exp %231 : vector<8x128xf32>
    %cst_40 = arith.constant 1.000000e+00 : f32
    %233 = vector.broadcast %cst_40 : f32 to vector<8x128xf32>
    %234 = arith.addf %233, %232 : vector<8x128xf32>
    %235 = arith.divf %233, %234 : vector<8x128xf32>
    %236 = arith.mulf %227, %209 : vector<8x128xf32>
    %237 = arith.mulf %221, %229 : vector<8x128xf32>
    %238 = arith.addf %236, %237 : vector<8x128xf32>
    %239 = math.tanh %238 : vector<8x128xf32>
    %240 = arith.mulf %235, %239 : vector<8x128xf32>
    %c0_41 = arith.constant 0 : index
    %c0_42 = arith.constant 0 : index
    %241 = vector.load %arg4[%c0_41, %c0_42] : memref<1x128xf32, #tpu.memory_space<vmem>>, vector<1x128xf32>
    %242 = vector.broadcast %241 : vector<1x128xf32> to vector<8x128xf32>
    %243 = arith.mulf %240, %242 : vector<8x128xf32>
    %cst_43 = arith.constant dense<0.000000e+00> : vector<8xf32>
    %244 = vector.multi_reduction <add>, %243, %cst_43 [1] : vector<8x128xf32> to vector<8xf32>
    %245 = vector.shape_cast %244 : vector<8xf32> to vector<8x1xf32>
    %c0_44 = arith.constant 0 : index
    %c0_45 = arith.constant 0 : index
    %246 = vector.load %arg5[%c0_44, %c0_45] : memref<1x1xf32, #tpu.memory_space<vmem>>, vector<1x1xf32>
    %247 = vector.broadcast %246 : vector<1x1xf32> to vector<8x1xf32>
    %248 = arith.addf %245, %247 : vector<8x1xf32>
    %c0_46 = arith.constant 0 : index
    %c0_47 = arith.constant 0 : index
    %249 = vector.load %arg6[%c0_46, %c0_47] : memref<8x1xf32, #tpu.memory_space<vmem>>, vector<8x1xf32>
    tpu.vector_store %arg6[%c0_46, %c0_47], %248 {strides = array<i32>} : memref<8x1xf32, #tpu.memory_space<vmem>>, vector<8x1xf32>,
    return
  }
}

</mosaic_0001>

<llo_original>
// kernel: lstm_predictor_forward.1
$region0: #{lstm_predictor_forward.1}
  #allocation0 [shape = 'u32[]', space=smem, size = 0x4, offset = 0x4, fixed_abs, tag = 'smem constant byte address 0x4 - core index']
  #allocation1 [shape = 'u32[144,128]{1,0:T(1,128)}', space=vmem, size = 0x12000, scoped, tag = 'internal scratch']
  #allocation2 [shape = 'f32[1,1]{1,0:T(1,128)S(1)}', space=vmem, size = 0x200, scoped, tag = 'scoped memory for lstm_predictor_forward.1']
  %s0 = inlined_call_operand.vmem [shape: bf16[64,128], index: 0, kind: input, shape index: {}]
  %s1 = inlined_call_operand.vmem [shape: bf16[128,512], index: 1, kind: input, shape index: {}]
  %s2 = inlined_call_operand.vmem [shape: bf16[128,512], index: 2, kind: input, shape index: {}]
  %s3 = inlined_call_operand.vmem [shape: f32[1,512], index: 3, kind: input, shape index: {}]
  %s4 = inlined_call_operand.vmem [shape: f32[1,128], index: 4, kind: input, shape index: {}]
  %s5 = inlined_call_operand.<no memory space> [shape: f32[1,1], index: 5, kind: input, shape index: {}]
  %s6 = inlined_call_operand.vmem [shape: f32[8,1], index: 6, kind: output, shape index: {}]
  %s7 = sld [smem:[#allocation0]]
  $region34: #{lstm_predictor_forward.1} parent=0
    _
  %s9 = ssub.s32 1, %s7
  %s10 = scalar_select 0, %s9, %s7
  %v11 = vstv %s5
  %12 = vst [vmem:[#allocation2] sm:$0x1] %v11
  // Predicated region
  $region2: #{lstm_predictor_forward.1} parent=0 // pred_check
    _
  $region3: #{lstm_predictor_forward.1} parent=0 // pred_check_branch
    %14 = sbr.rel (0) target = $region5
  $region4: #{lstm_predictor_forward.1} parent=0 // pred_region
    _
  $region5: #{lstm_predictor_forward.1} parent=0 // pred_fallthru
    _
  // Predicated region
  $region6: #{lstm_predictor_forward.1} parent=0 // pred_check
    _
  $region7: #{lstm_predictor_forward.1} parent=0 // pred_check_branch
    %16 = sbr.rel (0) target = $region9
  $region8: #{lstm_predictor_forward.1} parent=0 // pred_region
    _
  $region9: #{lstm_predictor_forward.1} parent=0 // pred_fallthru
    _
  // Predicated region
  $region10: #{lstm_predictor_forward.1} parent=0 // pred_check
    _
  $region11: #{lstm_predictor_forward.1} parent=0 // pred_check_branch
    %18 = sbr.rel (0) target = $region13
  $region12: #{lstm_predictor_forward.1} parent=0 // pred_region
    _
  $region13: #{lstm_predictor_forward.1} parent=0 // pred_fallthru
    _
  // Predicated region
  $region14: #{lstm_predictor_forward.1} parent=0 // pred_check
    _
  $region15: #{lstm_predictor_forward.1} parent=0 // pred_check_branch
    %20 = sbr.rel (0) target = $region17
  $region16: #{lstm_predictor_forward.1} parent=0 // pred_region
    _
  $region17: #{lstm_predictor_forward.1} parent=0 // pred_fallthru
    _
  // Predicated region
  $region18: #{lstm_predictor_forward.1} parent=0 // pred_check
    _
  $region19: #{lstm_predictor_forward.1} parent=0 // pred_check_branch
    %22 = sbr.rel (0) target = $region21
  $region20: #{lstm_predictor_forward.1} parent=0 // pred_region
    _
  $region21: #{lstm_predictor_forward.1} parent=0 // pred_fallthru
    _
  // Predicated region
  $region22: #{lstm_predictor_forward.1} parent=0 // pred_check
    _
  $region23: #{lstm_predictor_forward.1} parent=0 // pred_check_branch
    %24 = sbr.rel (0) target = $region25
  $region24: #{lstm_predictor_forward.1} parent=0 // pred_region
    _
  $region25: #{lstm_predictor_forward.1} parent=0 // pred_fallthru
    _
  %v26 = vld [vmem:[%s0] sm:$0xf]
  %v27 = vld [vmem:[%s0 + $0x4] sm:$0xf]
  %v28 = vld [vmem:[%s0 + $0x8] sm:$0xf]
  %v29 = vld [vmem:[%s0 + $0xc] sm:$0xf]
  %v30 = vld [vmem:[%s0 + $0x10] sm:$0xf]
  %v31 = vld [vmem:[%s0 + $0x14] sm:$0xf]
  %v32 = vld [vmem:[%s0 + $0x18] sm:$0xf]
  %v33 = vld [vmem:[%s0 + $0x1c] sm:$0xf]
  %v34 = vld [vmem:[%s1] sm:$0xff]
  %v35 = vld [vmem:[%s1 + $0x8] sm:$0xff]
  %v36 = vld [vmem:[%s1 + $0x10] sm:$0xff]
  %v37 = vld [vmem:[%s1 + $0x18] sm:$0xff]
  %v38 = vld [vmem:[%s1 + $0x20] sm:$0xff]
  %v39 = vld [vmem:[%s1 + $0x28] sm:$0xff]
  %v40 = vld [vmem:[%s1 + $0x30] sm:$0xff]
  %v41 = vld [vmem:[%s1 + $0x38] sm:$0xff]
  %v42 = vld [vmem:[%s1 + $0x40] sm:$0xff]
  %v43 = vld [vmem:[%s1 + $0x48] sm:$0xff]
  %v44 = vld [vmem:[%s1 + $0x50] sm:$0xff]
  %v45 = vld [vmem:[%s1 + $0x58] sm:$0xff]
  %v46 = vld [vmem:[%s1 + $0x60] sm:$0xff]
  %v47 = vld [vmem:[%s1 + $0x68] sm:$0xff]
  %v48 = vld [vmem:[%s1 + $0x70] sm:$0xff]
  %v49 = vld [vmem:[%s1 + $0x78] sm:$0xff]
  %v50 = vld [vmem:[%s1 + $0x80] sm:$0xff]
  %v51 = vld [vmem:[%s1 + $0x88] sm:$0xff]
  %v52 = vld [vmem:[%s1 + $0x90] sm:$0xff]
  %v53 = vld [vmem:[%s1 + $0x98] sm:$0xff]
  %v54 = vld [vmem:[%s1 + $0xa0] sm:$0xff]
  %v55 = vld [vmem:[%s1 + $0xa8] sm:$0xff]
  %v56 = vld [vmem:[%s1 + $0xb0] sm:$0xff]
  %v57 = vld [vmem:[%s1 + $0xb8] sm:$0xff]
  %v58 = vld [vmem:[%s1 + $0xc0] sm:$0xff]
  %v59 = vld [vmem:[%s1 + $0xc8] sm:$0xff]
  %v60 = vld [vmem:[%s1 + $0xd0] sm:$0xff]
  %v61 = vld [vmem:[%s1 + $0xd8] sm:$0xff]
  %v62 = vld [vmem:[%s1 + $0xe0] sm:$0xff]
  %v63 = vld [vmem:[%s1 + $0xe8] sm:$0xff]
  %v64 = vld [vmem:[%s1 + $0xf0] sm:$0xff]
  %v65 = vld [vmem:[%s1 + $0xf8] sm:$0xff]
  %v66 = vld [vmem:[%s3] sm:$0xf]
  %v68 = vlaneseq
  %v69 = vshrl.u32 %v68, 7
  %v70 = vsub.s32 0, %v69
  %v71 = vrot.slane %v66, %v70
  %v72 = vlaneseq
  %v73 = vshrl.u32 %v72, 7
  %v74 = vsub.s32 1, %v73
  %v75 = vrot.slane %v66, %v74
  %v76 = vlaneseq
  %v77 = vshrl.u32 %v76, 7
  %v78 = vsub.s32 2, %v77
  %v79 = vrot.slane %v66, %v78
  %v80 = vlaneseq
  %v81 = vshrl.u32 %v80, 7
  %v82 = vsub.s32 3, %v81
  %v83 = vrot.slane %v66, %v82
  %v96 = vunpack.c.l.b16 %v26
  %v97 = vunpack.c.l.b16 %v27
  %v98 = vunpack.c.l.b16 %v28
  %v99 = vunpack.c.l.b16 %v29
  %v100 = vunpack.c.l.b16 %v30
  %v101 = vunpack.c.l.b16 %v31
  %v102 = vunpack.c.l.b16 %v32
  %v103 = vunpack.c.l.b16 %v33
  %v104 = vpack.c.b16 %v97, %v96
  %v105 = vpack.c.b16 %v99, %v98
  %v106 = vpack.c.b16 %v101, %v100
  %v107 = vpack.c.b16 %v103, %v102
  %v144 = vunpack.c.l.b16 %v34
  %v145 = vunpack.c.h.b16 %v34
  %v146 = vunpack.c.l.b16 %v35
  %v147 = vunpack.c.h.b16 %v35
  %v148 = vunpack.c.l.b16 %v36
  %v149 = vunpack.c.h.b16 %v36
  %v150 = vunpack.c.l.b16 %v37
  %v151 = vunpack.c.h.b16 %v37
  %v152 = vunpack.c.l.b16 %v38
  %v153 = vunpack.c.h.b16 %v38
  %v154 = vunpack.c.l.b16 %v39
  %v155 = vunpack.c.h.b16 %v39
  %v156 = vunpack.c.l.b16 %v40
  %v157 = vunpack.c.h.b16 %v40
  %v158 = vunpack.c.l.b16 %v41
  %v159 = vunpack.c.h.b16 %v41
  %v160 = vunpack.c.l.b16 %v42
  %v161 = vunpack.c.h.b16 %v42
  %v162 = vunpack.c.l.b16 %v43
  %v163 = vunpack.c.h.b16 %v43
  %v164 = vunpack.c.l.b16 %v44
  %v165 = vunpack.c.h.b16 %v44
  %v166 = vunpack.c.l.b16 %v45
  %v167 = vunpack.c.h.b16 %v45
  %v168 = vunpack.c.l.b16 %v46
  %v169 = vunpack.c.h.b16 %v46
  %v170 = vunpack.c.l.b16 %v47
  %v171 = vunpack.c.h.b16 %v47
  %v172 = vunpack.c.l.b16 %v48
  %v173 = vunpack.c.h.b16 %v48
  %v174 = vunpack.c.l.b16 %v49
  %v175 = vunpack.c.h.b16 %v49
  %v176 = vunpack.c.l.b16 %v50
  %v177 = vunpack.c.h.b16 %v50
  %v178 = vunpack.c.l.b16 %v51
  %v179 = vunpack.c.h.b16 %v51
  %v180 = vunpack.c.l.b16 %v52
  %v181 = vunpack.c.h.b16 %v52
  %v182 = vunpack.c.l.b16 %v53
  %v183 = vunpack.c.h.b16 %v53
  %v184 = vunpack.c.l.b16 %v54
  %v185 = vunpack.c.h.b16 %v54
  %v186 = vunpack.c.l.b16 %v55
  %v187 = vunpack.c.h.b16 %v55
  %v188 = vunpack.c.l.b16 %v56
  %v189 = vunpack.c.h.b16 %v56
  %v190 = vunpack.c.l.b16 %v57
  %v191 = vunpack.c.h.b16 %v57
  %v192 = vunpack.c.l.b16 %v58
  %v193 = vunpack.c.h.b16 %v58
  %v194 = vunpack.c.l.b16 %v59
  %v195 = vunpack.c.h.b16 %v59
  %v196 = vunpack.c.l.b16 %v60
  %v197 = vunpack.c.h.b16 %v60
  %v198 = vunpack.c.l.b16 %v61
  %v199 = vunpack.c.h.b16 %v61
  %v200 = vunpack.c.l.b16 %v62
  %v201 = vunpack.c.h.b16 %v62
  %v202 = vunpack.c.l.b16 %v63
  %v203 = vunpack.c.h.b16 %v63
  %v204 = vunpack.c.l.b16 %v64
  %v205 = vunpack.c.h.b16 %v64
  %v206 = vunpack.c.l.b16 %v65
  %v207 = vunpack.c.h.b16 %v65
  %v208 = vpack.c.b16 %v148, %v144
  %v209 = vpack.c.b16 %v149, %v145
  %v210 = vpack.c.b16 %v150, %v146
  %v211 = vpack.c.b16 %v151, %v147
  %v212 = vpack.c.b16 %v156, %v152
  %v213 = vpack.c.b16 %v157, %v153
  %v214 = vpack.c.b16 %v158, %v154
  %v215 = vpack.c.b16 %v159, %v155
  %v216 = vpack.c.b16 %v164, %v160
  %v217 = vpack.c.b16 %v165, %v161
  %v218 = vpack.c.b16 %v166, %v162
  %v219 = vpack.c.b16 %v167, %v163
  %v220 = vpack.c.b16 %v172, %v168
  %v221 = vpack.c.b16 %v173, %v169
  %v222 = vpack.c.b16 %v174, %v170
  %v223 = vpack.c.b16 %v175, %v171
  %v224 = vpack.c.b16 %v180, %v176
  %v225 = vpack.c.b16 %v181, %v177
  %v226 = vpack.c.b16 %v182, %v178
  %v227 = vpack.c.b16 %v183, %v179
  %v228 = vpack.c.b16 %v188, %v184
  %v229 = vpack.c.b16 %v189, %v185
  %v230 = vpack.c.b16 %v190, %v186
  %v231 = vpack.c.b16 %v191, %v187
  %v232 = vpack.c.b16 %v196, %v192
  %v233 = vpack.c.b16 %v197, %v193
  %v234 = vpack.c.b16 %v198, %v194
  %v235 = vpack.c.b16 %v199, %v195
  %v236 = vpack.c.b16 %v204, %v200
  %v237 = vpack.c.b16 %v205, %v201
  %v238 = vpack.c.b16 %v206, %v202
  %v239 = vpack.c.b16 %v207, %v203
  %272 = vmatprep.subr.bf16.mxu0 %v237
  %273 = vmatpush1.bf16.msra.mxu0 %v236
  %274 = vmatprep.subr.bf16.mxu0 %v233
  %275 = vmatpush1.bf16.msra.mxu0 %v232
  %276 = vmatprep.subr.bf16.mxu0 %v229
  %277 = vmatpush1.bf16.msra.mxu0 %v228
  %278 = vmatprep.subr.bf16.mxu0 %v225
  %279 = vmatpush1.bf16.msra.mxu0 %v224
  %280 = vmatprep.subr.bf16.mxu0 %v221
  %281 = vmatpush1.bf16.msra.mxu0 %v220
  %282 = vmatprep.subr.bf16.mxu0 %v217
  %283 = vmatpush1.bf16.msra.mxu0 %v216
  %284 = vmatprep.subr.bf16.mxu0 %v213
  %285 = vmatpush1.bf16.msra.mxu0 %v212
  %286 = vmatprep.subr.bf16.mxu0 %v209
  %287 = vmatpush1.bf16.msra.mxu0 %v208
  %288 = vmatprep.subr.bf16.mxu0 0
  %289 = vmatpush2.bf16.msra.mxu0 0
  %290 = vmatprep.subr.bf16.mxu0 0
  %291 = vmatpush2.bf16.msra.mxu0 0
  %292 = vmatprep.subr.bf16.mxu0 0
  %293 = vmatpush2.bf16.msra.mxu0 0
  %294 = vmatprep.subr.bf16.mxu0 0
  %295 = vmatpush2.bf16.msra.mxu0 0
  %296 = vmatprep.subr.bf16.mxu0 0
  %297 = vmatpush2.bf16.msra.mxu0 0
  %298 = vmatprep.subr.bf16.mxu0 0
  %299 = vmatpush2.bf16.msra.mxu0 0
  %300 = vmatprep.subr.bf16.mxu0 0
  %301 = vmatpush2.bf16.msra.mxu0 0
  %302 = vmatprep.subr.bf16.mxu0 0
  %303 = vmatpush2.bf16.msra.mxu0 0
  %304 = vmatprep.mubr.bf16.mxu0 0
  %305 = vmatmul.mubr.bf16.gmra.mxu0 %v104
  %v306 = vpop.f32.mrf.mxu0
  %v307 = vadd.f32 %v71, %v306
  %v308 = vpop.f32.mrf.mxu0
  %v309 = vadd.f32 %v75, %v308
  %v310 = vpop.f32.mrf.mxu0
  %v311 = vadd.f32 %v71, %v310
  %v312 = vpop.f32.mrf.mxu0
  %v313 = vadd.f32 %v75, %v312
  %314 = vmatprep.mubr.bf16.mxu0 0
  %315 = vmatmul.mubr.bf16.gmra.mxu0 %v105
  %v316 = vpop.f32.mrf.mxu0
  %v317 = vadd.f32 %v71, %v316
  %v318 = vpop.f32.mrf.mxu0
  %v319 = vadd.f32 %v75, %v318
  %v320 = vpop.f32.mrf.mxu0
  %v321 = vadd.f32 %v71, %v320
  %v322 = vpop.f32.mrf.mxu0
  %v323 = vadd.f32 %v75, %v322
  %324 = vmatprep.mubr.bf16.mxu0 0
  %325 = vmatmul.mubr.bf16.gmra.mxu0 %v106
  %v326 = vpop.f32.mrf.mxu0
  %v327 = vadd.f32 %v71, %v326
  %v328 = vpop.f32.mrf.mxu0
  %v329 = vadd.f32 %v75, %v328
  %v330 = vpop.f32.mrf.mxu0
  %v331 = vadd.f32 %v71, %v330
  %v332 = vpop.f32.mrf.mxu0
  %v333 = vadd.f32 %v75, %v332
  %334 = vmatprep.mubr.bf16.mxu0 0
  %335 = vmatmul.mubr.bf16.gmra.mxu0 %v107
  %v336 = vpop.f32.mrf.mxu0
  %v337 = vadd.f32 %v71, %v336
  %v338 = vpop.f32.mrf.mxu0
  %v339 = vadd.f32 %v75, %v338
  %v340 = vpop.f32.mrf.mxu0
  %v341 = vadd.f32 %v71, %v340
  %v342 = vpop.f32.mrf.mxu0
  %v343 = vadd.f32 %v75, %v342
  %344 = vdwg.mxu0
  %345 = vmatprep.subr.bf16.mxu0 %v239
  %346 = vmatpush1.bf16.msra.mxu0 %v238
  %347 = vmatprep.subr.bf16.mxu0 %v235
  %348 = vmatpush1.bf16.msra.mxu0 %v234
  %349 = vmatprep.subr.bf16.mxu0 %v231
  %350 = vmatpush1.bf16.msra.mxu0 %v230
  %351 = vmatprep.subr.bf16.mxu0 %v227
  %352 = vmatpush1.bf16.msra.mxu0 %v226
  %353 = vmatprep.subr.bf16.mxu0 %v223
  %354 = vmatpush1.bf16.msra.mxu0 %v222
  %355 = vmatprep.subr.bf16.mxu0 %v219
  %356 = vmatpush1.bf16.msra.mxu0 %v218
  %357 = vmatprep.subr.bf16.mxu0 %v215
  %358 = vmatpush1.bf16.msra.mxu0 %v214
  %359 = vmatprep.subr.bf16.mxu0 %v211
  %360 = vmatpush1.bf16.msra.mxu0 %v210
  %361 = vmatprep.subr.bf16.mxu0 0
  %362 = vmatpush2.bf16.msra.mxu0 0
  %363 = vmatprep.subr.bf16.mxu0 0
  %364 = vmatpush2.bf16.msra.mxu0 0
  %365 = vmatprep.subr.bf16.mxu0 0
  %366 = vmatpush2.bf16.msra.mxu0 0
  %367 = vmatprep.subr.bf16.mxu0 0
  %368 = vmatpush2.bf16.msra.mxu0 0
  %369 = vmatprep.subr.bf16.mxu0 0
  %370 = vmatpush2.bf16.msra.mxu0 0
  %371 = vmatprep.subr.bf16.mxu0 0
  %372 = vmatpush2.bf16.msra.mxu0 0
  %373 = vmatprep.subr.bf16.mxu0 0
  %374 = vmatpush2.bf16.msra.mxu0 0
  %375 = vmatprep.subr.bf16.mxu0 0
  %376 = vmatpush2.bf16.msra.mxu0 0
  %377 = vmatprep.mubr.bf16.mxu0 0
  %378 = vmatmul.mubr.bf16.gmra.mxu0 %v104
  %v379 = vpop.f32.mrf.mxu0
  %v380 = vadd.f32 %v79, %v379
  %v381 = vpop.f32.mrf.mxu0
  %v382 = vadd.f32 %v83, %v381
  %v383 = vpop.f32.mrf.mxu0
  %v384 = vadd.f32 %v79, %v383
  %v385 = vpop.f32.mrf.mxu0
  %v386 = vadd.f32 %v83, %v385
  %387 = vmatprep.mubr.bf16.mxu0 0
  %388 = vmatmul.mubr.bf16.gmra.mxu0 %v105
  %v389 = vpop.f32.mrf.mxu0
  %v390 = vadd.f32 %v79, %v389
  %v391 = vpop.f32.mrf.mxu0
  %v392 = vadd.f32 %v83, %v391
  %v393 = vpop.f32.mrf.mxu0
  %v394 = vadd.f32 %v79, %v393
  %v395 = vpop.f32.mrf.mxu0
  %v396 = vadd.f32 %v83, %v395
  %397 = vmatprep.mubr.bf16.mxu0 0
  %398 = vmatmul.mubr.bf16.gmra.mxu0 %v106
  %v399 = vpop.f32.mrf.mxu0
  %v400 = vadd.f32 %v79, %v399
  %v401 = vpop.f32.mrf.mxu0
  %v402 = vadd.f32 %v83, %v401
  %v403 = vpop.f32.mrf.mxu0
  %v404 = vadd.f32 %v79, %v403
  %v405 = vpop.f32.mrf.mxu0
  %v406 = vadd.f32 %v83, %v405
  %407 = vmatprep.mubr.bf16.mxu0 0
  %408 = vmatmul.mubr.bf16.gmra.mxu0 %v107
  %v409 = vpop.f32.mrf.mxu0
  %v410 = vadd.f32 %v79, %v409
  %v411 = vpop.f32.mrf.mxu0
  %v412 = vadd.f32 %v83, %v411
  %v413 = vpop.f32.mrf.mxu0
  %v414 = vadd.f32 %v79, %v413
  %v415 = vpop.f32.mrf.mxu0
  %v416 = vadd.f32 %v83, %v415
  %417 = vdwg.mxu0
  %v418 = vld [vmem:[%s2] sm:$0xff]
  %v419 = vld [vmem:[%s2 + $0x8] sm:$0xff]
  %v420 = vld [vmem:[%s2 + $0x10] sm:$0xff]
  %v421 = vld [vmem:[%s2 + $0x18] sm:$0xff]
  %v422 = vld [vmem:[%s2 + $0x20] sm:$0xff]
  %v423 = vld [vmem:[%s2 + $0x28] sm:$0xff]
  %v424 = vld [vmem:[%s2 + $0x30] sm:$0xff]
  %v425 = vld [vmem:[%s2 + $0x38] sm:$0xff]
  %v426 = vld [vmem:[%s2 + $0x40] sm:$0xff]
  %v427 = vld [vmem:[%s2 + $0x48] sm:$0xff]
  %v428 = vld [vmem:[%s2 + $0x50] sm:$0xff]
  %v429 = vld [vmem:[%s2 + $0x58] sm:$0xff]
  %v430 = vld [vmem:[%s2 + $0x60] sm:$0xff]
  %v431 = vld [vmem:[%s2 + $0x68] sm:$0xff]
  %v432 = vld [vmem:[%s2 + $0x70] sm:$0xff]
  %v433 = vld [vmem:[%s2 + $0x78] sm:$0xff]
  %v434 = vld [vmem:[%s2 + $0x80] sm:$0xff]
  %v435 = vld [vmem:[%s2 + $0x88] sm:$0xff]
  %v436 = vld [vmem:[%s2 + $0x90] sm:$0xff]
  %v437 = vld [vmem:[%s2 + $0x98] sm:$0xff]
  %v438 = vld [vmem:[%s2 + $0xa0] sm:$0xff]
  %v439 = vld [vmem:[%s2 + $0xa8] sm:$0xff]
  %v440 = vld [vmem:[%s2 + $0xb0] sm:$0xff]
  %v441 = vld [vmem:[%s2 + $0xb8] sm:$0xff]
  %v442 = vld [vmem:[%s2 + $0xc0] sm:$0xff]
  %v443 = vld [vmem:[%s2 + $0xc8] sm:$0xff]
  %v444 = vld [vmem:[%s2 + $0xd0] sm:$0xff]
  %v445 = vld [vmem:[%s2 + $0xd8] sm:$0xff]
  %v446 = vld [vmem:[%s2 + $0xe0] sm:$0xff]
  %v447 = vld [vmem:[%s2 + $0xe8] sm:$0xff]
  %v448 = vld [vmem:[%s2 + $0xf0] sm:$0xff]
  %v449 = vld [vmem:[%s2 + $0xf8] sm:$0xff]
  %v482 = vunpack.c.l.b16 %v418
  %v483 = vunpack.c.h.b16 %v418
  %v484 = vunpack.c.l.b16 %v419
  %v485 = vunpack.c.h.b16 %v419
  %v486 = vunpack.c.l.b16 %v420
  %v487 = vunpack.c.h.b16 %v420
  %v488 = vunpack.c.l.b16 %v421
  %v489 = vunpack.c.h.b16 %v421
  %v490 = vunpack.c.l.b16 %v422
  %v491 = vunpack.c.h.b16 %v422
  %v492 = vunpack.c.l.b16 %v423
  %v493 = vunpack.c.h.b16 %v423
  %v494 = vunpack.c.l.b16 %v424
  %v495 = vunpack.c.h.b16 %v424
  %v496 = vunpack.c.l.b16 %v425
  %v497 = vunpack.c.h.b16 %v425
  %v498 = vunpack.c.l.b16 %v426
  %v499 = vunpack.c.h.b16 %v426
  %v500 = vunpack.c.l.b16 %v427
  %v501 = vunpack.c.h.b16 %v427
  %v502 = vunpack.c.l.b16 %v428
  %v503 = vunpack.c.h.b16 %v428
  %v504 = vunpack.c.l.b16 %v429
  %v505 = vunpack.c.h.b16 %v429
  %v506 = vunpack.c.l.b16 %v430
  %v507 = vunpack.c.h.b16 %v430
  %v508 = vunpack.c.l.b16 %v431
  %v509 = vunpack.c.h.b16 %v431
  %v510 = vunpack.c.l.b16 %v432
  %v511 = vunpack.c.h.b16 %v432
  %v512 = vunpack.c.l.b16 %v433
  %v513 = vunpack.c.h.b16 %v433
  %v514 = vunpack.c.l.b16 %v434
  %v515 = vunpack.c.h.b16 %v434
  %v516 = vunpack.c.l.b16 %v435
  %v517 = vunpack.c.h.b16 %v435
  %v518 = vunpack.c.l.b16 %v436
  %v519 = vunpack.c.h.b16 %v436
  %v520 = vunpack.c.l.b16 %v437
  %v521 = vunpack.c.h.b16 %v437
  %v522 = vunpack.c.l.b16 %v438
  %v523 = vunpack.c.h.b16 %v438
  %v524 = vunpack.c.l.b16 %v439
  %v525 = vunpack.c.h.b16 %v439
  %v526 = vunpack.c.l.b16 %v440
  %v527 = vunpack.c.h.b16 %v440
  %v528 = vunpack.c.l.b16 %v441
  %v529 = vunpack.c.h.b16 %v441
  %v530 = vunpack.c.l.b16 %v442
  %v531 = vunpack.c.h.b16 %v442
  %v532 = vunpack.c.l.b16 %v443
  %v533 = vunpack.c.h.b16 %v443
  %v534 = vunpack.c.l.b16 %v444
  %v535 = vunpack.c.h.b16 %v444
  %v536 = vunpack.c.l.b16 %v445
  %v537 = vunpack.c.h.b16 %v445
  %v538 = vunpack.c.l.b16 %v446
  %v539 = vunpack.c.h.b16 %v446
  %v540 = vunpack.c.l.b16 %v447
  %v541 = vunpack.c.h.b16 %v447
  %v542 = vunpack.c.l.b16 %v448
  %v543 = vunpack.c.h.b16 %v448
  %v544 = vunpack.c.l.b16 %v449
  %v545 = vunpack.c.h.b16 %v449
  %v546 = vpack.c.b16 %v486, %v482
  %v547 = vpack.c.b16 %v487, %v483
  %v548 = vpack.c.b16 %v488, %v484
  %v549 = vpack.c.b16 %v489, %v485
  %v550 = vpack.c.b16 %v494, %v490
  %v551 = vpack.c.b16 %v495, %v491
  %v552 = vpack.c.b16 %v496, %v492
  %v553 = vpack.c.b16 %v497, %v493
  %v554 = vpack.c.b16 %v502, %v498
  %v555 = vpack.c.b16 %v503, %v499
  %v556 = vpack.c.b16 %v504, %v500
  %v557 = vpack.c.b16 %v505, %v501
  %v558 = vpack.c.b16 %v510, %v506
  %v559 = vpack.c.b16 %v511, %v507
  %v560 = vpack.c.b16 %v512, %v508
  %v561 = vpack.c.b16 %v513, %v509
  %v562 = vpack.c.b16 %v518, %v514
  %v563 = vpack.c.b16 %v519, %v515
  %v564 = vpack.c.b16 %v520, %v516
  %v565 = vpack.c.b16 %v521, %v517
  %v566 = vpack.c.b16 %v526, %v522
  %v567 = vpack.c.b16 %v527, %v523
  %v568 = vpack.c.b16 %v528, %v524
  %v569 = vpack.c.b16 %v529, %v525
  %v570 = vpack.c.b16 %v534, %v530
  %v571 = vpack.c.b16 %v535, %v531
  %v572 = vpack.c.b16 %v536, %v532
  %v573 = vpack.c.b16 %v537, %v533
  %v574 = vpack.c.b16 %v542, %v538
  %v575 = vpack.c.b16 %v543, %v539
  %v576 = vpack.c.b16 %v544, %v540
  %v577 = vpack.c.b16 %v545, %v541
  %610 = vmatprep.subr.bf16.mxu0 %v575
  %611 = vmatpush1.bf16.msra.mxu0 %v574
  %612 = vmatprep.subr.bf16.mxu0 %v571
  %613 = vmatpush1.bf16.msra.mxu0 %v570
  %614 = vmatprep.subr.bf16.mxu0 %v567
  %615 = vmatpush1.bf16.msra.mxu0 %v566
  %616 = vmatprep.subr.bf16.mxu0 %v563
  %617 = vmatpush1.bf16.msra.mxu0 %v562
  %618 = vmatprep.subr.bf16.mxu0 %v559
  %619 = vmatpush1.bf16.msra.mxu0 %v558
  %620 = vmatprep.subr.bf16.mxu0 %v555
  %621 = vmatpush1.bf16.msra.mxu0 %v554
  %622 = vmatprep.subr.bf16.mxu0 %v551
  %623 = vmatpush1.bf16.msra.mxu0 %v550
  %624 = vmatprep.subr.bf16.mxu0 %v547
  %625 = vmatpush1.bf16.msra.mxu0 %v546
  %626 = vmatprep.subr.bf16.mxu0 0
  %627 = vmatpush2.bf16.msra.mxu0 0
  %628 = vmatprep.subr.bf16.mxu0 0
  %629 = vmatpush2.bf16.msra.mxu0 0
  %630 = vmatprep.subr.bf16.mxu0 0
  %631 = vmatpush2.bf16.msra.mxu0 0
  %632 = vmatprep.subr.bf16.mxu0 0
  %633 = vmatpush2.bf16.msra.mxu0 0
  %634 = vmatprep.subr.bf16.mxu0 0
  %635 = vmatpush2.bf16.msra.mxu0 0
  %636 = vmatprep.subr.bf16.mxu0 0
  %637 = vmatpush2.bf16.msra.mxu0 0
  %638 = vmatprep.subr.bf16.mxu0 0
  %639 = vmatpush2.bf16.msra.mxu0 0
  %640 = vmatprep.subr.bf16.mxu0 0
  %641 = vmatpush2.bf16.msra.mxu0 0
  %642 = vmatprep.mubr.bf16.mxu0 0
  %643 = vmatmul.mubr.bf16.gmra.mxu0 0
  %v644 = vpop.f32.mrf.mxu0
  %v645 = vadd.f32 0.0, %v644
  %v646 = vpop.f32.mrf.mxu0
  %v647 = vadd.f32 0.0, %v646
  %v648 = vpop.f32.mrf.mxu0
  %v649 = vpop.f32.mrf.mxu0
  %650 = vdwg.mxu0
  %651 = vmatprep.subr.bf16.mxu0 %v577
  %652 = vmatpush1.bf16.msra.mxu0 %v576
  %653 = vmatprep.subr.bf16.mxu0 %v573
  %654 = vmatpush1.bf16.msra.mxu0 %v572
  %655 = vmatprep.subr.bf16.mxu0 %v569
  %656 = vmatpush1.bf16.msra.mxu0 %v568
  %657 = vmatprep.subr.bf16.mxu0 %v565
  %658 = vmatpush1.bf16.msra.mxu0 %v564
  %659 = vmatprep.subr.bf16.mxu0 %v561
  %660 = vmatpush1.bf16.msra.mxu0 %v560
  %661 = vmatprep.subr.bf16.mxu0 %v557
  %662 = vmatpush1.bf16.msra.mxu0 %v556
  %663 = vmatprep.subr.bf16.mxu0 %v553
  %664 = vmatpush1.bf16.msra.mxu0 %v552
  %665 = vmatprep.subr.bf16.mxu0 %v549
  %666 = vmatpush1.bf16.msra.mxu0 %v548
  %667 = vmatprep.subr.bf16.mxu0 0
  %668 = vmatpush2.bf16.msra.mxu0 0
  %669 = vmatprep.subr.bf16.mxu0 0
  %670 = vmatpush2.bf16.msra.mxu0 0
  %671 = vmatprep.subr.bf16.mxu0 0
  %672 = vmatpush2.bf16.msra.mxu0 0
  %673 = vmatprep.subr.bf16.mxu0 0
  %674 = vmatpush2.bf16.msra.mxu0 0
  %675 = vmatprep.subr.bf16.mxu0 0
  %676 = vmatpush2.bf16.msra.mxu0 0
  %677 = vmatprep.subr.bf16.mxu0 0
  %678 = vmatpush2.bf16.msra.mxu0 0
  %679 = vmatprep.subr.bf16.mxu0 0
  %680 = vmatpush2.bf16.msra.mxu0 0
  %681 = vmatprep.subr.bf16.mxu0 0
  %682 = vmatpush2.bf16.msra.mxu0 0
  %683 = vmatprep.mubr.bf16.mxu0 0
  %684 = vmatmul.mubr.bf16.gmra.mxu0 0
  %v685 = vpop.f32.mrf.mxu0
  %v686 = vadd.f32 0.0, %v685
  %v687 = vpop.f32.mrf.mxu0
  %v688 = vadd.f32 0.0, %v687
  %v689 = vpop.f32.mrf.mxu0
  %v690 = vpop.f32.mrf.mxu0
  %691 = vdwg.mxu0
  %v692 = vadd.f32 %v307, %v645
  %v693 = vadd.f32 %v309, %v647
  %v694 = vadd.f32 %v380, %v686
  %v695 = vadd.f32 %v382, %v688
  %v696 = vxor.u32 %v692, 2147483648
  %v697 = vmul.f32 %v696, 1.442695
  %v698 = vpow.pop %v697
  %v699 = vadd.f32 %v698, 1.0
  %v700 = vrcp.pop %v699
  %v701 = vmul.f32 1.0, %v700
  %v702 = vxor.u32 %v693, 2147483648
  %v703 = vmul.f32 %v702, 1.442695
  %v704 = vpow.pop %v703
  %v705 = vadd.f32 %v704, 1.0
  %v706 = vrcp.pop %v705
  %v707 = vmul.f32 1.0, %v706
  %v708 = vtanh.pop %v694
  %v709 = vxor.u32 %v695, 2147483648
  %v710 = vmul.f32 %v709, 1.442695
  %v711 = vpow.pop %v710
  %v712 = vadd.f32 %v711, 1.0
  %v713 = vrcp.pop %v712
  %v714 = vmul.f32 1.0, %v713
  %v715 = vmul.f32 %v707, 0.0
  %v716 = vmul.f32 %v701, %v708
  %v717 = vadd.f32 %v715, %v716
  %v718 = vtanh.pop %v717
  %v719 = vmul.f32 %v714, %v718
  %v720 = vpack.c.bf16 %v719, %v719
  %721 = vmatprep.subr.bf16.mxu0 %v575
  %722 = vmatpush1.bf16.msra.mxu0 %v574
  %723 = vmatprep.subr.bf16.mxu0 %v571
  %724 = vmatpush1.bf16.msra.mxu0 %v570
  %725 = vmatprep.subr.bf16.mxu0 %v567
  %726 = vmatpush1.bf16.msra.mxu0 %v566
  %727 = vmatprep.subr.bf16.mxu0 %v563
  %728 = vmatpush1.bf16.msra.mxu0 %v562
  %729 = vmatprep.subr.bf16.mxu0 %v559
  %730 = vmatpush1.bf16.msra.mxu0 %v558
  %731 = vmatprep.subr.bf16.mxu0 %v555
  %732 = vmatpush1.bf16.msra.mxu0 %v554
  %733 = vmatprep.subr.bf16.mxu0 %v551
  %734 = vmatpush1.bf16.msra.mxu0 %v550
  %735 = vmatprep.subr.bf16.mxu0 %v547
  %736 = vmatpush1.bf16.msra.mxu0 %v546
  %737 = vmatprep.subr.bf16.mxu0 0
  %738 = vmatpush2.bf16.msra.mxu0 0
  %739 = vmatprep.subr.bf16.mxu0 0
  %740 = vmatpush2.bf16.msra.mxu0 0
  %741 = vmatprep.subr.bf16.mxu0 0
  %742 = vmatpush2.bf16.msra.mxu0 0
  %743 = vmatprep.subr.bf16.mxu0 0
  %744 = vmatpush2.bf16.msra.mxu0 0
  %745 = vmatprep.subr.bf16.mxu0 0
  %746 = vmatpush2.bf16.msra.mxu0 0
  %747 = vmatprep.subr.bf16.mxu0 0
  %748 = vmatpush2.bf16.msra.mxu0 0
  %749 = vmatprep.subr.bf16.mxu0 0
  %750 = vmatpush2.bf16.msra.mxu0 0
  %751 = vmatprep.subr.bf16.mxu0 0
  %752 = vmatpush2.bf16.msra.mxu0 0
  %753 = vmatprep.mubr.bf16.mxu0 0
  %754 = vmatmul.mubr.bf16.gmra.mxu0 %v720
  %v755 = vpop.f32.mrf.mxu0
  %v756 = vadd.f32 0.0, %v755
  %v757 = vpop.f32.mrf.mxu0
  %v758 = vadd.f32 0.0, %v757
  %v759 = vpop.f32.mrf.mxu0
  %v760 = vpop.f32.mrf.mxu0
  %761 = vdwg.mxu0
  %762 = vmatprep.subr.bf16.mxu0 %v577
  %763 = vmatpush1.bf16.msra.mxu0 %v576
  %764 = vmatprep.subr.bf16.mxu0 %v573
  %765 = vmatpush1.bf16.msra.mxu0 %v572
  %766 = vmatprep.subr.bf16.mxu0 %v569
  %767 = vmatpush1.bf16.msra.mxu0 %v568
  %768 = vmatprep.subr.bf16.mxu0 %v565
  %769 = vmatpush1.bf16.msra.mxu0 %v564
  %770 = vmatprep.subr.bf16.mxu0 %v561
  %771 = vmatpush1.bf16.msra.mxu0 %v560
  %772 = vmatprep.subr.bf16.mxu0 %v557
  %773 = vmatpush1.bf16.msra.mxu0 %v556
  %774 = vmatprep.subr.bf16.mxu0 %v553
  %775 = vmatpush1.bf16.msra.mxu0 %v552
  %776 = vmatprep.subr.bf16.mxu0 %v549
  %777 = vmatpush1.bf16.msra.mxu0 %v548
  %778 = vmatprep.subr.bf16.mxu0 0
  %779 = vmatpush2.bf16.msra.mxu0 0
  %780 = vmatprep.subr.bf16.mxu0 0
  %781 = vmatpush2.bf16.msra.mxu0 0
  %782 = vmatprep.subr.bf16.mxu0 0
  %783 = vmatpush2.bf16.msra.mxu0 0
  %784 = vmatprep.subr.bf16.mxu0 0
  %785 = vmatpush2.bf16.msra.mxu0 0
  %786 = vmatprep.subr.bf16.mxu0 0
  %787 = vmatpush2.bf16.msra.mxu0 0
  %788 = vmatprep.subr.bf16.mxu0 0
  %789 = vmatpush2.bf16.msra.mxu0 0
  %790 = vmatprep.subr.bf16.mxu0 0
  %791 = vmatpush2.bf16.msra.mxu0 0
  %792 = vmatprep.subr.bf16.mxu0 0
  %793 = vmatpush2.bf16.msra.mxu0 0
  %794 = vmatprep.mubr.bf16.mxu0 0
  %795 = vmatmul.mubr.bf16.gmra.mxu0 %v720
  %v796 = vpop.f32.mrf.mxu0
  %v797 = vadd.f32 0.0, %v796
  %v798 = vpop.f32.mrf.mxu0
  %v799 = vadd.f32 0.0, %v798
  %v800 = vpop.f32.mrf.mxu0
  %v801 = vpop.f32.mrf.mxu0
  %802 = vdwg.mxu0
  %v803 = vadd.f32 %v311, %v756
  %v804 = vadd.f32 %v313, %v758
  %v805 = vadd.f32 %v384, %v797
  %v806 = vadd.f32 %v386, %v799
  %v807 = vxor.u32 %v803, 2147483648
  %v808 = vmul.f32 %v807, 1.442695
  %v809 = vpow.pop %v808
  %v810 = vadd.f32 %v809, 1.0
  %v811 = vrcp.pop %v810
  %v812 = vmul.f32 1.0, %v811
  %v813 = vxor.u32 %v804, 2147483648
  %v814 = vmul.f32 %v813, 1.442695
  %v815 = vpow.pop %v814
  %v816 = vadd.f32 %v815, 1.0
  %v817 = vrcp.pop %v816
  %v818 = vmul.f32 1.0, %v817
  %v819 = vtanh.pop %v805
  %v820 = vxor.u32 %v806, 2147483648
  %v821 = vmul.f32 %v820, 1.442695
  %v822 = vpow.pop %v821
  %v823 = vadd.f32 %v822, 1.0
  %v824 = vrcp.pop %v823
  %v825 = vmul.f32 1.0, %v824
  %v826 = vmul.f32 %v818, %v717
  %v827 = vmul.f32 %v812, %v819
  %v828 = vadd.f32 %v826, %v827
  %v829 = vtanh.pop %v828
  %v830 = vmul.f32 %v825, %v829
  %v831 = vpack.c.bf16 %v830, %v830
  %832 = vmatprep.subr.bf16.mxu0 %v575
  %833 = vmatpush1.bf16.msra.mxu0 %v574
  %834 = vmatprep.subr.bf16.mxu0 %v571
  %835 = vmatpush1.bf16.msra.mxu0 %v570
  %836 = vmatprep.subr.bf16.mxu0 %v567
  %837 = vmatpush1.bf16.msra.mxu0 %v566
  %838 = vmatprep.subr.bf16.mxu0 %v563
  %839 = vmatpush1.bf16.msra.mxu0 %v562
  %840 = vmatprep.subr.bf16.mxu0 %v559
  %841 = vmatpush1.bf16.msra.mxu0 %v558
  %842 = vmatprep.subr.bf16.mxu0 %v555
  %843 = vmatpush1.bf16.msra.mxu0 %v554
  %844 = vmatprep.subr.bf16.mxu0 %v551
  %845 = vmatpush1.bf16.msra.mxu0 %v550
  %846 = vmatprep.subr.bf16.mxu0 %v547
  %847 = vmatpush1.bf16.msra.mxu0 %v546
  %848 = vmatprep.subr.bf16.mxu0 0
  %849 = vmatpush2.bf16.msra.mxu0 0
  %850 = vmatprep.subr.bf16.mxu0 0
  %851 = vmatpush2.bf16.msra.mxu0 0
  %852 = vmatprep.subr.bf16.mxu0 0
  %853 = vmatpush2.bf16.msra.mxu0 0
  %854 = vmatprep.subr.bf16.mxu0 0
  %855 = vmatpush2.bf16.msra.mxu0 0
  %856 = vmatprep.subr.bf16.mxu0 0
  %857 = vmatpush2.bf16.msra.mxu0 0
  %858 = vmatprep.subr.bf16.mxu0 0
  %859 = vmatpush2.bf16.msra.mxu0 0
  %860 = vmatprep.subr.bf16.mxu0 0
  %861 = vmatpush2.bf16.msra.mxu0 0
  %862 = vmatprep.subr.bf16.mxu0 0
  %863 = vmatpush2.bf16.msra.mxu0 0
  %864 = vmatprep.mubr.bf16.mxu0 0
  %865 = vmatmul.mubr.bf16.gmra.mxu0 %v831
  %v866 = vpop.f32.mrf.mxu0
  %v867 = vadd.f32 0.0, %v866
  %v868 = vpop.f32.mrf.mxu0
  %v869 = vadd.f32 0.0, %v868
  %v870 = vpop.f32.mrf.mxu0
  %v871 = vpop.f32.mrf.mxu0
  %872 = vdwg.mxu0
  %873 = vmatprep.subr.bf16.mxu0 %v577
  %874 = vmatpush1.bf16.msra.mxu0 %v576
  %875 = vmatprep.subr.bf16.mxu0 %v573
  %876 = vmatpush1.bf16.msra.mxu0 %v572
  %877 = vmatprep.subr.bf16.mxu0 %v569
  %878 = vmatpush1.bf16.msra.mxu0 %v568
  %879 = vmatprep.subr.bf16.mxu0 %v565
  %880 = vmatpush1.bf16.msra.mxu0 %v564
  %881 = vmatprep.subr.bf16.mxu0 %v561
  %882 = vmatpush1.bf16.msra.mxu0 %v560
  %883 = vmatprep.subr.bf16.mxu0 %v557
  %884 = vmatpush1.bf16.msra.mxu0 %v556
  %885 = vmatprep.subr.bf16.mxu0 %v553
  %886 = vmatpush1.bf16.msra.mxu0 %v552
  %887 = vmatprep.subr.bf16.mxu0 %v549
  %888 = vmatpush1.bf16.msra.mxu0 %v548
  %889 = vmatprep.subr.bf16.mxu0 0
  %890 = vmatpush2.bf16.msra.mxu0 0
  %891 = vmatprep.subr.bf16.mxu0 0
  %892 = vmatpush2.bf16.msra.mxu0 0
  %893 = vmatprep.subr.bf16.mxu0 0
  %894 = vmatpush2.bf16.msra.mxu0 0
  %895 = vmatprep.subr.bf16.mxu0 0
  %896 = vmatpush2.bf16.msra.mxu0 0
  %897 = vmatprep.subr.bf16.mxu0 0
  %898 = vmatpush2.bf16.msra.mxu0 0
  %899 = vmatprep.subr.bf16.mxu0 0
  %900 = vmatpush2.bf16.msra.mxu0 0
  %901 = vmatprep.subr.bf16.mxu0 0
  %902 = vmatpush2.bf16.msra.mxu0 0
  %903 = vmatprep.subr.bf16.mxu0 0
  %904 = vmatpush2.bf16.msra.mxu0 0
  %905 = vmatprep.mubr.bf16.mxu0 0
  %906 = vmatmul.mubr.bf16.gmra.mxu0 %v831
  %v907 = vpop.f32.mrf.mxu0
  %v908 = vadd.f32 0.0, %v907
  %v909 = vpop.f32.mrf.mxu0
  %v910 = vadd.f32 0.0, %v909
  %v911 = vpop.f32.mrf.mxu0
  %v912 = vpop.f32.mrf.mxu0
  %913 = vdwg.mxu0
  %v914 = vadd.f32 %v317, %v867
  %v915 = vadd.f32 %v319, %v869
  %v916 = vadd.f32 %v390, %v908
  %v917 = vadd.f32 %v392, %v910
  %v918 = vxor.u32 %v914, 2147483648
  %v919 = vmul.f32 %v918, 1.442695
  %v920 = vpow.pop %v919
  %v921 = vadd.f32 %v920, 1.0
  %v922 = vrcp.pop %v921
  %v923 = vmul.f32 1.0, %v922
  %v924 = vxor.u32 %v915, 2147483648
  %v925 = vmul.f32 %v924, 1.442695
  %v926 = vpow.pop %v925
  %v927 = vadd.f32 %v926, 1.0
  %v928 = vrcp.pop %v927
  %v929 = vmul.f32 1.0, %v928
  %v930 = vtanh.pop %v916
  %v931 = vxor.u32 %v917, 2147483648
  %v932 = vmul.f32 %v931, 1.442695
  %v933 = vpow.pop %v932
  %v934 = vadd.f32 %v933, 1.0
  %v935 = vrcp.pop %v934
  %v936 = vmul.f32 1.0, %v935
  %v937 = vmul.f32 %v929, %v828
  %v938 = vmul.f32 %v923, %v930
  %v939 = vadd.f32 %v937, %v938
  %v940 = vtanh.pop %v939
  %v941 = vmul.f32 %v936, %v940
  %v942 = vpack.c.bf16 %v941, %v941
  %943 = vmatprep.subr.bf16.mxu0 %v575
  %944 = vmatpush1.bf16.msra.mxu0 %v574
  %945 = vmatprep.subr.bf16.mxu0 %v571
  %946 = vmatpush1.bf16.msra.mxu0 %v570
  %947 = vmatprep.subr.bf16.mxu0 %v567
  %948 = vmatpush1.bf16.msra.mxu0 %v566
  %949 = vmatprep.subr.bf16.mxu0 %v563
  %950 = vmatpush1.bf16.msra.mxu0 %v562
  %951 = vmatprep.subr.bf16.mxu0 %v559
  %952 = vmatpush1.bf16.msra.mxu0 %v558
  %953 = vmatprep.subr.bf16.mxu0 %v555
  %954 = vmatpush1.bf16.msra.mxu0 %v554
  %955 = vmatprep.subr.bf16.mxu0 %v551
  %956 = vmatpush1.bf16.msra.mxu0 %v550
  %957 = vmatprep.subr.bf16.mxu0 %v547
  %958 = vmatpush1.bf16.msra.mxu0 %v546
  %959 = vmatprep.subr.bf16.mxu0 0
  %960 = vmatpush2.bf16.msra.mxu0 0
  %961 = vmatprep.subr.bf16.mxu0 0
  %962 = vmatpush2.bf16.msra.mxu0 0
  %963 = vmatprep.subr.bf16.mxu0 0
  %964 = vmatpush2.bf16.msra.mxu0 0
  %965 = vmatprep.subr.bf16.mxu0 0
  %966 = vmatpush2.bf16.msra.mxu0 0
  %967 = vmatprep.subr.bf16.mxu0 0
  %968 = vmatpush2.bf16.msra.mxu0 0
  %969 = vmatprep.subr.bf16.mxu0 0
  %970 = vmatpush2.bf16.msra.mxu0 0
  %971 = vmatprep.subr.bf16.mxu0 0
  %972 = vmatpush2.bf16.msra.mxu0 0
  %973 = vmatprep.subr.bf16.mxu0 0
  %974 = vmatpush2.bf16.msra.mxu0 0
  %975 = vmatprep.mubr.bf16.mxu0 0
  %976 = vmatmul.mubr.bf16.gmra.mxu0 %v942
  %v977 = vpop.f32.mrf.mxu0
  %v978 = vadd.f32 0.0, %v977
  %v979 = vpop.f32.mrf.mxu0
  %v980 = vadd.f32 0.0, %v979
  %v981 = vpop.f32.mrf.mxu0
  %v982 = vpop.f32.mrf.mxu0
  %983 = vdwg.mxu0
  %984 = vmatprep.subr.bf16.mxu0 %v577
  %985 = vmatpush1.bf16.msra.mxu0 %v576
  %986 = vmatprep.subr.bf16.mxu0 %v573
  %987 = vmatpush1.bf16.msra.mxu0 %v572
  %988 = vmatprep.subr.bf16.mxu0 %v569
  %989 = vmatpush1.bf16.msra.mxu0 %v568
  %990 = vmatprep.subr.bf16.mxu0 %v565
  %991 = vmatpush1.bf16.msra.mxu0 %v564
  %992 = vmatprep.subr.bf16.mxu0 %v561
  %993 = vmatpush1.bf16.msra.mxu0 %v560
  %994 = vmatprep.subr.bf16.mxu0 %v557
  %995 = vmatpush1.bf16.msra.mxu0 %v556
  %996 = vmatprep.subr.bf16.mxu0 %v553
  %997 = vmatpush1.bf16.msra.mxu0 %v552
  %998 = vmatprep.subr.bf16.mxu0 %v549
  %999 = vmatpush1.bf16.msra.mxu0 %v548
  %1000 = vmatprep.subr.bf16.mxu0 0
  %1001 = vmatpush2.bf16.msra.mxu0 0
  %1002 = vmatprep.subr.bf16.mxu0 0
  %1003 = vmatpush2.bf16.msra.mxu0 0
  %1004 = vmatprep.subr.bf16.mxu0 0
  %1005 = vmatpush2.bf16.msra.mxu0 0
  %1006 = vmatprep.subr.bf16.mxu0 0
  %1007 = vmatpush2.bf16.msra.mxu0 0
  %1008 = vmatprep.subr.bf16.mxu0 0
  %1009 = vmatpush2.bf16.msra.mxu0 0
  %1010 = vmatprep.subr.bf16.mxu0 0
  %1011 = vmatpush2.bf16.msra.mxu0 0
  %1012 = vmatprep.subr.bf16.mxu0 0
  %1013 = vmatpush2.bf16.msra.mxu0 0
  %1014 = vmatprep.subr.bf16.mxu0 0
  %1015 = vmatpush2.bf16.msra.mxu0 0
  %1016 = vmatprep.mubr.bf16.mxu0 0
  %1017 = vmatmul.mubr.bf16.gmra.mxu0 %v942
  %v1018 = vpop.f32.mrf.mxu0
  %v1019 = vadd.f32 0.0, %v1018
  %v1020 = vpop.f32.mrf.mxu0
  %v1021 = vadd.f32 0.0, %v1020
  %v1022 = vpop.f32.mrf.mxu0
  %v1023 = vpop.f32.mrf.mxu0
  %1024 = vdwg.mxu0
  %v1025 = vadd.f32 %v321, %v978
  %v1026 = vadd.f32 %v323, %v980
  %v1027 = vadd.f32 %v394, %v1019
  %v1028 = vadd.f32 %v396, %v1021
  %v1029 = vxor.u32 %v1025, 2147483648
  %v1030 = vmul.f32 %v1029, 1.442695
  %v1031 = vpow.pop %v1030
  %v1032 = vadd.f32 %v1031, 1.0
  %v1033 = vrcp.pop %v1032
  %v1034 = vmul.f32 1.0, %v1033
  %v1035 = vxor.u32 %v1026, 2147483648
  %v1036 = vmul.f32 %v1035, 1.442695
  %v1037 = vpow.pop %v1036
  %v1038 = vadd.f32 %v1037, 1.0
  %v1039 = vrcp.pop %v1038
  %v1040 = vmul.f32 1.0, %v1039
  %v1041 = vtanh.pop %v1027
  %v1042 = vxor.u32 %v1028, 2147483648
  %v1043 = vmul.f32 %v1042, 1.442695
  %v1044 = vpow.pop %v1043
  %v1045 = vadd.f32 %v1044, 1.0
  %v1046 = vrcp.pop %v1045
  %v1047 = vmul.f32 1.0, %v1046
  %v1048 = vmul.f32 %v1040, %v939
  %v1049 = vmul.f32 %v1034, %v1041
  %v1050 = vadd.f32 %v1048, %v1049
  %v1051 = vtanh.pop %v1050
  %v1052 = vmul.f32 %v1047, %v1051
  %v1053 = vpack.c.bf16 %v1052, %v1052
  %1054 = vmatprep.subr.bf16.mxu0 %v575
  %1055 = vmatpush1.bf16.msra.mxu0 %v574
  %1056 = vmatprep.subr.bf16.mxu0 %v571
  %1057 = vmatpush1.bf16.msra.mxu0 %v570
  %1058 = vmatprep.subr.bf16.mxu0 %v567
  %1059 = vmatpush1.bf16.msra.mxu0 %v566
  %1060 = vmatprep.subr.bf16.mxu0 %v563
  %1061 = vmatpush1.bf16.msra.mxu0 %v562
  %1062 = vmatprep.subr.bf16.mxu0 %v559
  %1063 = vmatpush1.bf16.msra.mxu0 %v558
  %1064 = vmatprep.subr.bf16.mxu0 %v555
  %1065 = vmatpush1.bf16.msra.mxu0 %v554
  %1066 = vmatprep.subr.bf16.mxu0 %v551
  %1067 = vmatpush1.bf16.msra.mxu0 %v550
  %1068 = vmatprep.subr.bf16.mxu0 %v547
  %1069 = vmatpush1.bf16.msra.mxu0 %v546
  %1070 = vmatprep.subr.bf16.mxu0 0
  %1071 = vmatpush2.bf16.msra.mxu0 0
  %1072 = vmatprep.subr.bf16.mxu0 0
  %1073 = vmatpush2.bf16.msra.mxu0 0
  %1074 = vmatprep.subr.bf16.mxu0 0
  %1075 = vmatpush2.bf16.msra.mxu0 0
  %1076 = vmatprep.subr.bf16.mxu0 0
  %1077 = vmatpush2.bf16.msra.mxu0 0
  %1078 = vmatprep.subr.bf16.mxu0 0
  %1079 = vmatpush2.bf16.msra.mxu0 0
  %1080 = vmatprep.subr.bf16.mxu0 0
  %1081 = vmatpush2.bf16.msra.mxu0 0
  %1082 = vmatprep.subr.bf16.mxu0 0
  %1083 = vmatpush2.bf16.msra.mxu0 0
  %1084 = vmatprep.subr.bf16.mxu0 0
  %1085 = vmatpush2.bf16.msra.mxu0 0
  %1086 = vmatprep.mubr.bf16.mxu0 0
  %1087 = vmatmul.mubr.bf16.gmra.mxu0 %v1053
  %v1088 = vpop.f32.mrf.mxu0
  %v1089 = vadd.f32 0.0, %v1088
  %v1090 = vpop.f32.mrf.mxu0
  %v1091 = vadd.f32 0.0, %v1090
  %v1092 = vpop.f32.mrf.mxu0
  %v1093 = vpop.f32.mrf.mxu0
  %1094 = vdwg.mxu0
  %1095 = vmatprep.subr.bf16.mxu0 %v577
  %1096 = vmatpush1.bf16.msra.mxu0 %v576
  %1097 = vmatprep.subr.bf16.mxu0 %v573
  %1098 = vmatpush1.bf16.msra.mxu0 %v572
  %1099 = vmatprep.subr.bf16.mxu0 %v569
  %1100 = vmatpush1.bf16.msra.mxu0 %v568
  %1101 = vmatprep.subr.bf16.mxu0 %v565
  %1102 = vmatpush1.bf16.msra.mxu0 %v564
  %1103 = vmatprep.subr.bf16.mxu0 %v561
  %1104 = vmatpush1.bf16.msra.mxu0 %v560
  %1105 = vmatprep.subr.bf16.mxu0 %v557
  %1106 = vmatpush1.bf16.msra.mxu0 %v556
  %1107 = vmatprep.subr.bf16.mxu0 %v553
  %1108 = vmatpush1.bf16.msra.mxu0 %v552
  %1109 = vmatprep.subr.bf16.mxu0 %v549
  %1110 = vmatpush1.bf16.msra.mxu0 %v548
  %1111 = vmatprep.subr.bf16.mxu0 0
  %1112 = vmatpush2.bf16.msra.mxu0 0
  %1113 = vmatprep.subr.bf16.mxu0 0
  %1114 = vmatpush2.bf16.msra.mxu0 0
  %1115 = vmatprep.subr.bf16.mxu0 0
  %1116 = vmatpush2.bf16.msra.mxu0 0
  %1117 = vmatprep.subr.bf16.mxu0 0
  %1118 = vmatpush2.bf16.msra.mxu0 0
  %1119 = vmatprep.subr.bf16.mxu0 0
  %1120 = vmatpush2.bf16.msra.mxu0 0
  %1121 = vmatprep.subr.bf16.mxu0 0
  %1122 = vmatpush2.bf16.msra.mxu0 0
  %1123 = vmatprep.subr.bf16.mxu0 0
  %1124 = vmatpush2.bf16.msra.mxu0 0
  %1125 = vmatprep.subr.bf16.mxu0 0
  %1126 = vmatpush2.bf16.msra.mxu0 0
  %1127 = vmatprep.mubr.bf16.mxu0 0
  %1128 = vmatmul.mubr.bf16.gmra.mxu0 %v1053
  %v1129 = vpop.f32.mrf.mxu0
  %v1130 = vadd.f32 0.0, %v1129
  %v1131 = vpop.f32.mrf.mxu0
  %v1132 = vadd.f32 0.0, %v1131
  %v1133 = vpop.f32.mrf.mxu0
  %v1134 = vpop.f32.mrf.mxu0
  %1135 = vdwg.mxu0
  %v1136 = vadd.f32 %v327, %v1089
  %v1137 = vadd.f32 %v329, %v1091
  %v1138 = vadd.f32 %v400, %v1130
  %v1139 = vadd.f32 %v402, %v1132
  %v1140 = vxor.u32 %v1136, 2147483648
  %v1141 = vmul.f32 %v1140, 1.442695
  %v1142 = vpow.pop %v1141
  %v1143 = vadd.f32 %v1142, 1.0
  %v1144 = vrcp.pop %v1143
  %v1145 = vmul.f32 1.0, %v1144
  %v1146 = vxor.u32 %v1137, 2147483648
  %v1147 = vmul.f32 %v1146, 1.442695
  %v1148 = vpow.pop %v1147
  %v1149 = vadd.f32 %v1148, 1.0
  %v1150 = vrcp.pop %v1149
  %v1151 = vmul.f32 1.0, %v1150
  %v1152 = vtanh.pop %v1138
  %v1153 = vxor.u32 %v1139, 2147483648
  %v1154 = vmul.f32 %v1153, 1.442695
  %v1155 = vpow.pop %v1154
  %v1156 = vadd.f32 %v1155, 1.0
  %v1157 = vrcp.pop %v1156
  %v1158 = vmul.f32 1.0, %v1157
  %v1159 = vmul.f32 %v1151, %v1050
  %v1160 = vmul.f32 %v1145, %v1152
  %v1161 = vadd.f32 %v1159, %v1160
  %v1162 = vtanh.pop %v1161
  %v1163 = vmul.f32 %v1158, %v1162
  %v1164 = vpack.c.bf16 %v1163, %v1163
  %1165 = vmatprep.subr.bf16.mxu0 %v575
  %1166 = vmatpush1.bf16.msra.mxu0 %v574
  %1167 = vmatprep.subr.bf16.mxu0 %v571
  %1168 = vmatpush1.bf16.msra.mxu0 %v570
  %1169 = vmatprep.subr.bf16.mxu0 %v567
  %1170 = vmatpush1.bf16.msra.mxu0 %v566
  %1171 = vmatprep.subr.bf16.mxu0 %v563
  %1172 = vmatpush1.bf16.msra.mxu0 %v562
  %1173 = vmatprep.subr.bf16.mxu0 %v559
  %1174 = vmatpush1.bf16.msra.mxu0 %v558
  %1175 = vmatprep.subr.bf16.mxu0 %v555
  %1176 = vmatpush1.bf16.msra.mxu0 %v554
  %1177 = vmatprep.subr.bf16.mxu0 %v551
  %1178 = vmatpush1.bf16.msra.mxu0 %v550
  %1179 = vmatprep.subr.bf16.mxu0 %v547
  %1180 = vmatpush1.bf16.msra.mxu0 %v546
  %1181 = vmatprep.subr.bf16.mxu0 0
  %1182 = vmatpush2.bf16.msra.mxu0 0
  %1183 = vmatprep.subr.bf16.mxu0 0
  %1184 = vmatpush2.bf16.msra.mxu0 0
  %1185 = vmatprep.subr.bf16.mxu0 0
  %1186 = vmatpush2.bf16.msra.mxu0 0
  %1187 = vmatprep.subr.bf16.mxu0 0
  %1188 = vmatpush2.bf16.msra.mxu0 0
  %1189 = vmatprep.subr.bf16.mxu0 0
  %1190 = vmatpush2.bf16.msra.mxu0 0
  %1191 = vmatprep.subr.bf16.mxu0 0
  %1192 = vmatpush2.bf16.msra.mxu0 0
  %1193 = vmatprep.subr.bf16.mxu0 0
  %1194 = vmatpush2.bf16.msra.mxu0 0
  %1195 = vmatprep.subr.bf16.mxu0 0
  %1196 = vmatpush2.bf16.msra.mxu0 0
  %1197 = vmatprep.mubr.bf16.mxu0 0
  %1198 = vmatmul.mubr.bf16.gmra.mxu0 %v1164
  %v1199 = vpop.f32.mrf.mxu0
  %v1200 = vadd.f32 0.0, %v1199
  %v1201 = vpop.f32.mrf.mxu0
  %v1202 = vadd.f32 0.0, %v1201
  %v1203 = vpop.f32.mrf.mxu0
  %v1204 = vpop.f32.mrf.mxu0
  %1205 = vdwg.mxu0
  %1206 = vmatprep.subr.bf16.mxu0 %v577
  %1207 = vmatpush1.bf16.msra.mxu0 %v576
  %1208 = vmatprep.subr.bf16.mxu0 %v573
  %1209 = vmatpush1.bf16.msra.mxu0 %v572
  %1210 = vmatprep.subr.bf16.mxu0 %v569
  %1211 = vmatpush1.bf16.msra.mxu0 %v568
  %1212 = vmatprep.subr.bf16.mxu0 %v565
  %1213 = vmatpush1.bf16.msra.mxu0 %v564
  %1214 = vmatprep.subr.bf16.mxu0 %v561
  %1215 = vmatpush1.bf16.msra.mxu0 %v560
  %1216 = vmatprep.subr.bf16.mxu0 %v557
  %1217 = vmatpush1.bf16.msra.mxu0 %v556
  %1218 = vmatprep.subr.bf16.mxu0 %v553
  %1219 = vmatpush1.bf16.msra.mxu0 %v552
  %1220 = vmatprep.subr.bf16.mxu0 %v549
  %1221 = vmatpush1.bf16.msra.mxu0 %v548
  %1222 = vmatprep.subr.bf16.mxu0 0
  %1223 = vmatpush2.bf16.msra.mxu0 0
  %1224 = vmatprep.subr.bf16.mxu0 0
  %1225 = vmatpush2.bf16.msra.mxu0 0
  %1226 = vmatprep.subr.bf16.mxu0 0
  %1227 = vmatpush2.bf16.msra.mxu0 0
  %1228 = vmatprep.subr.bf16.mxu0 0
  %1229 = vmatpush2.bf16.msra.mxu0 0
  %1230 = vmatprep.subr.bf16.mxu0 0
  %1231 = vmatpush2.bf16.msra.mxu0 0
  %1232 = vmatprep.subr.bf16.mxu0 0
  %1233 = vmatpush2.bf16.msra.mxu0 0
  %1234 = vmatprep.subr.bf16.mxu0 0
  %1235 = vmatpush2.bf16.msra.mxu0 0
  %1236 = vmatprep.subr.bf16.mxu0 0
  %1237 = vmatpush2.bf16.msra.mxu0 0
  %1238 = vmatprep.mubr.bf16.mxu0 0
  %1239 = vmatmul.mubr.bf16.gmra.mxu0 %v1164
  %v1240 = vpop.f32.mrf.mxu0
  %v1241 = vadd.f32 0.0, %v1240
  %v1242 = vpop.f32.mrf.mxu0
  %v1243 = vadd.f32 0.0, %v1242
  %v1244 = vpop.f32.mrf.mxu0
  %v1245 = vpop.f32.mrf.mxu0
  %1246 = vdwg.mxu0
  %v1247 = vadd.f32 %v331, %v1200
  %v1248 = vadd.f32 %v333, %v1202
  %v1249 = vadd.f32 %v404, %v1241
  %v1250 = vadd.f32 %v406, %v1243
  %v1251 = vxor.u32 %v1247, 2147483648
  %v1252 = vmul.f32 %v1251, 1.442695
  %v1253 = vpow.pop %v1252
  %v1254 = vadd.f32 %v1253, 1.0
  %v1255 = vrcp.pop %v1254
  %v1256 = vmul.f32 1.0, %v1255
  %v1257 = vxor.u32 %v1248, 2147483648
  %v1258 = vmul.f32 %v1257, 1.442695
  %v1259 = vpow.pop %v1258
  %v1260 = vadd.f32 %v1259, 1.0
  %v1261 = vrcp.pop %v1260
  %v1262 = vmul.f32 1.0, %v1261
  %v1263 = vtanh.pop %v1249
  %v1264 = vxor.u32 %v1250, 2147483648
  %v1265 = vmul.f32 %v1264, 1.442695
  %v1266 = vpow.pop %v1265
  %v1267 = vadd.f32 %v1266, 1.0
  %v1268 = vrcp.pop %v1267
  %v1269 = vmul.f32 1.0, %v1268
  %v1270 = vmul.f32 %v1262, %v1161
  %v1271 = vmul.f32 %v1256, %v1263
  %v1272 = vadd.f32 %v1270, %v1271
  %v1273 = vtanh.pop %v1272
  %v1274 = vmul.f32 %v1269, %v1273
  %v1275 = vpack.c.bf16 %v1274, %v1274
  %1276 = vmatprep.subr.bf16.mxu0 %v575
  %1277 = vmatpush1.bf16.msra.mxu0 %v574
  %1278 = vmatprep.subr.bf16.mxu0 %v571
  %1279 = vmatpush1.bf16.msra.mxu0 %v570
  %1280 = vmatprep.subr.bf16.mxu0 %v567
  %1281 = vmatpush1.bf16.msra.mxu0 %v566
  %1282 = vmatprep.subr.bf16.mxu0 %v563
  %1283 = vmatpush1.bf16.msra.mxu0 %v562
  %1284 = vmatprep.subr.bf16.mxu0 %v559
  %1285 = vmatpush1.bf16.msra.mxu0 %v558
  %1286 = vmatprep.subr.bf16.mxu0 %v555
  %1287 = vmatpush1.bf16.msra.mxu0 %v554
  %1288 = vmatprep.subr.bf16.mxu0 %v551
  %1289 = vmatpush1.bf16.msra.mxu0 %v550
  %1290 = vmatprep.subr.bf16.mxu0 %v547
  %1291 = vmatpush1.bf16.msra.mxu0 %v546
  %1292 = vmatprep.subr.bf16.mxu0 0
  %1293 = vmatpush2.bf16.msra.mxu0 0
  %1294 = vmatprep.subr.bf16.mxu0 0
  %1295 = vmatpush2.bf16.msra.mxu0 0
  %1296 = vmatprep.subr.bf16.mxu0 0
  %1297 = vmatpush2.bf16.msra.mxu0 0
  %1298 = vmatprep.subr.bf16.mxu0 0
  %1299 = vmatpush2.bf16.msra.mxu0 0
  %1300 = vmatprep.subr.bf16.mxu0 0
  %1301 = vmatpush2.bf16.msra.mxu0 0
  %1302 = vmatprep.subr.bf16.mxu0 0
  %1303 = vmatpush2.bf16.msra.mxu0 0
  %1304 = vmatprep.subr.bf16.mxu0 0
  %1305 = vmatpush2.bf16.msra.mxu0 0
  %1306 = vmatprep.subr.bf16.mxu0 0
  %1307 = vmatpush2.bf16.msra.mxu0 0
  %1308 = vmatprep.mubr.bf16.mxu0 0
  %1309 = vmatmul.mubr.bf16.gmra.mxu0 %v1275
  %v1310 = vpop.f32.mrf.mxu0
  %v1311 = vadd.f32 0.0, %v1310
  %v1312 = vpop.f32.mrf.mxu0
  %v1313 = vadd.f32 0.0, %v1312
  %v1314 = vpop.f32.mrf.mxu0
  %v1315 = vpop.f32.mrf.mxu0
  %1316 = vdwg.mxu0
  %1317 = vmatprep.subr.bf16.mxu0 %v577
  %1318 = vmatpush1.bf16.msra.mxu0 %v576
  %1319 = vmatprep.subr.bf16.mxu0 %v573
  %1320 = vmatpush1.bf16.msra.mxu0 %v572
  %1321 = vmatprep.subr.bf16.mxu0 %v569
  %1322 = vmatpush1.bf16.msra.mxu0 %v568
  %1323 = vmatprep.subr.bf16.mxu0 %v565
  %1324 = vmatpush1.bf16.msra.mxu0 %v564
  %1325 = vmatprep.subr.bf16.mxu0 %v561
  %1326 = vmatpush1.bf16.msra.mxu0 %v560
  %1327 = vmatprep.subr.bf16.mxu0 %v557
  %1328 = vmatpush1.bf16.msra.mxu0 %v556
  %1329 = vmatprep.subr.bf16.mxu0 %v553
  %1330 = vmatpush1.bf16.msra.mxu0 %v552
  %1331 = vmatprep.subr.bf16.mxu0 %v549
  %1332 = vmatpush1.bf16.msra.mxu0 %v548
  %1333 = vmatprep.subr.bf16.mxu0 0
  %1334 = vmatpush2.bf16.msra.mxu0 0
  %1335 = vmatprep.subr.bf16.mxu0 0
  %1336 = vmatpush2.bf16.msra.mxu0 0
  %1337 = vmatprep.subr.bf16.mxu0 0
  %1338 = vmatpush2.bf16.msra.mxu0 0
  %1339 = vmatprep.subr.bf16.mxu0 0
  %1340 = vmatpush2.bf16.msra.mxu0 0
  %1341 = vmatprep.subr.bf16.mxu0 0
  %1342 = vmatpush2.bf16.msra.mxu0 0
  %1343 = vmatprep.subr.bf16.mxu0 0
  %1344 = vmatpush2.bf16.msra.mxu0 0
  %1345 = vmatprep.subr.bf16.mxu0 0
  %1346 = vmatpush2.bf16.msra.mxu0 0
  %1347 = vmatprep.subr.bf16.mxu0 0
  %1348 = vmatpush2.bf16.msra.mxu0 0
  %1349 = vmatprep.mubr.bf16.mxu0 0
  %1350 = vmatmul.mubr.bf16.gmra.mxu0 %v1275
  %v1351 = vpop.f32.mrf.mxu0
  %v1352 = vadd.f32 0.0, %v1351
  %v1353 = vpop.f32.mrf.mxu0
  %v1354 = vadd.f32 0.0, %v1353
  %v1355 = vpop.f32.mrf.mxu0
  %v1356 = vpop.f32.mrf.mxu0
  %1357 = vdwg.mxu0
  %v1358 = vadd.f32 %v337, %v1311
  %v1359 = vadd.f32 %v339, %v1313
  %v1360 = vadd.f32 %v410, %v1352
  %v1361 = vadd.f32 %v412, %v1354
  %v1362 = vxor.u32 %v1358, 2147483648
  %v1363 = vmul.f32 %v1362, 1.442695
  %v1364 = vpow.pop %v1363
  %v1365 = vadd.f32 %v1364, 1.0
  %v1366 = vrcp.pop %v1365
  %v1367 = vmul.f32 1.0, %v1366
  %v1368 = vxor.u32 %v1359, 2147483648
  %v1369 = vmul.f32 %v1368, 1.442695
  %v1370 = vpow.pop %v1369
  %v1371 = vadd.f32 %v1370, 1.0
  %v1372 = vrcp.pop %v1371
  %v1373 = vmul.f32 1.0, %v1372
  %v1374 = vtanh.pop %v1360
  %v1375 = vxor.u32 %v1361, 2147483648
  %v1376 = vmul.f32 %v1375, 1.442695
  %v1377 = vpow.pop %v1376
  %v1378 = vadd.f32 %v1377, 1.0
  %v1379 = vrcp.pop %v1378
  %v1380 = vmul.f32 1.0, %v1379
  %v1381 = vmul.f32 %v1373, %v1272
  %v1382 = vmul.f32 %v1367, %v1374
  %v1383 = vadd.f32 %v1381, %v1382
  %v1384 = vtanh.pop %v1383
  %v1385 = vmul.f32 %v1380, %v1384
  %v1386 = vpack.c.bf16 %v1385, %v1385
  %1387 = vmatprep.subr.bf16.mxu0 %v575
  %1388 = vmatpush1.bf16.msra.mxu0 %v574
  %1389 = vmatprep.subr.bf16.mxu0 %v571
  %1390 = vmatpush1.bf16.msra.mxu0 %v570
  %1391 = vmatprep.subr.bf16.mxu0 %v567
  %1392 = vmatpush1.bf16.msra.mxu0 %v566
  %1393 = vmatprep.subr.bf16.mxu0 %v563
  %1394 = vmatpush1.bf16.msra.mxu0 %v562
  %1395 = vmatprep.subr.bf16.mxu0 %v559
  %1396 = vmatpush1.bf16.msra.mxu0 %v558
  %1397 = vmatprep.subr.bf16.mxu0 %v555
  %1398 = vmatpush1.bf16.msra.mxu0 %v554
  %1399 = vmatprep.subr.bf16.mxu0 %v551
  %1400 = vmatpush1.bf16.msra.mxu0 %v550
  %1401 = vmatprep.subr.bf16.mxu0 %v547
  %1402 = vmatpush1.bf16.msra.mxu0 %v546
  %1403 = vmatprep.subr.bf16.mxu0 0
  %1404 = vmatpush2.bf16.msra.mxu0 0
  %1405 = vmatprep.subr.bf16.mxu0 0
  %1406 = vmatpush2.bf16.msra.mxu0 0
  %1407 = vmatprep.subr.bf16.mxu0 0
  %1408 = vmatpush2.bf16.msra.mxu0 0
  %1409 = vmatprep.subr.bf16.mxu0 0
  %1410 = vmatpush2.bf16.msra.mxu0 0
  %1411 = vmatprep.subr.bf16.mxu0 0
  %1412 = vmatpush2.bf16.msra.mxu0 0
  %1413 = vmatprep.subr.bf16.mxu0 0
  %1414 = vmatpush2.bf16.msra.mxu0 0
  %1415 = vmatprep.subr.bf16.mxu0 0
  %1416 = vmatpush2.bf16.msra.mxu0 0
  %1417 = vmatprep.subr.bf16.mxu0 0
  %1418 = vmatpush2.bf16.msra.mxu0 0
  %1419 = vmatprep.mubr.bf16.mxu0 0
  %1420 = vmatmul.mubr.bf16.gmra.mxu0 %v1386
  %v1421 = vpop.f32.mrf.mxu0
  %v1422 = vadd.f32 0.0, %v1421
  %v1423 = vpop.f32.mrf.mxu0
  %v1424 = vadd.f32 0.0, %v1423
  %v1425 = vpop.f32.mrf.mxu0
  %v1426 = vpop.f32.mrf.mxu0
  %1427 = vdwg.mxu0
  %1428 = vmatprep.subr.bf16.mxu0 %v577
  %1429 = vmatpush1.bf16.msra.mxu0 %v576
  %1430 = vmatprep.subr.bf16.mxu0 %v573
  %1431 = vmatpush1.bf16.msra.mxu0 %v572
  %1432 = vmatprep.subr.bf16.mxu0 %v569
  %1433 = vmatpush1.bf16.msra.mxu0 %v568
  %1434 = vmatprep.subr.bf16.mxu0 %v565
  %1435 = vmatpush1.bf16.msra.mxu0 %v564
  %1436 = vmatprep.subr.bf16.mxu0 %v561
  %1437 = vmatpush1.bf16.msra.mxu0 %v560
  %1438 = vmatprep.subr.bf16.mxu0 %v557
  %1439 = vmatpush1.bf16.msra.mxu0 %v556
  %1440 = vmatprep.subr.bf16.mxu0 %v553
  %1441 = vmatpush1.bf16.msra.mxu0 %v552
  %1442 = vmatprep.subr.bf16.mxu0 %v549
  %1443 = vmatpush1.bf16.msra.mxu0 %v548
  %1444 = vmatprep.subr.bf16.mxu0 0
  %1445 = vmatpush2.bf16.msra.mxu0 0
  %1446 = vmatprep.subr.bf16.mxu0 0
  %1447 = vmatpush2.bf16.msra.mxu0 0
  %1448 = vmatprep.subr.bf16.mxu0 0
  %1449 = vmatpush2.bf16.msra.mxu0 0
  %1450 = vmatprep.subr.bf16.mxu0 0
  %1451 = vmatpush2.bf16.msra.mxu0 0
  %1452 = vmatprep.subr.bf16.mxu0 0
  %1453 = vmatpush2.bf16.msra.mxu0 0
  %1454 = vmatprep.subr.bf16.mxu0 0
  %1455 = vmatpush2.bf16.msra.mxu0 0
  %1456 = vmatprep.subr.bf16.mxu0 0
  %1457 = vmatpush2.bf16.msra.mxu0 0
  %1458 = vmatprep.subr.bf16.mxu0 0
  %1459 = vmatpush2.bf16.msra.mxu0 0
  %1460 = vmatprep.mubr.bf16.mxu0 0
  %1461 = vmatmul.mubr.bf16.gmra.mxu0 %v1386
  %v1462 = vpop.f32.mrf.mxu0
  %v1463 = vadd.f32 0.0, %v1462
  %v1464 = vpop.f32.mrf.mxu0
  %v1465 = vadd.f32 0.0, %v1464
  %v1466 = vpop.f32.mrf.mxu0
  %v1467 = vpop.f32.mrf.mxu0
  %1468 = vdwg.mxu0
  %v1469 = vadd.f32 %v341, %v1422
  %v1470 = vadd.f32 %v343, %v1424
  %v1471 = vadd.f32 %v414, %v1463
  %v1472 = vadd.f32 %v416, %v1465
  %v1473 = vxor.u32 %v1469, 2147483648
  %v1474 = vmul.f32 %v1473, 1.442695
  %v1475 = vpow.pop %v1474
  %v1476 = vadd.f32 %v1475, 1.0
  %v1477 = vrcp.pop %v1476
  %v1478 = vmul.f32 1.0, %v1477
  %v1479 = vxor.u32 %v1470, 2147483648
  %v1480 = vmul.f32 %v1479, 1.442695
  %v1481 = vpow.pop %v1480
  %v1482 = vadd.f32 %v1481, 1.0
  %v1483 = vrcp.pop %v1482
  %v1484 = vmul.f32 1.0, %v1483
  %v1485 = vtanh.pop %v1471
  %v1486 = vxor.u32 %v1472, 2147483648
  %v1487 = vmul.f32 %v1486, 1.442695
  %v1488 = vpow.pop %v1487
  %v1489 = vadd.f32 %v1488, 1.0
  %v1490 = vrcp.pop %v1489
  %v1491 = vmul.f32 1.0, %v1490
  %v1492 = vmul.f32 %v1484, %v1383
  %v1493 = vmul.f32 %v1478, %v1485
  %v1494 = vadd.f32 %v1492, %v1493
  %v1495 = vtanh.pop %v1494
  %v1496 = vmul.f32 %v1491, %v1495
  %v1497 = vld [vmem:[%s4] sm:$0x1]
  %v1499 = vlaneseq
  %v1500 = vshrl.u32 %v1499, 7
  %v1501 = vsub.s32 0, %v1500
  %v1502 = vrot.slane %v1497, %v1501
  %v1504 = vmul.f32 %v1496, %v1502
  %1505 = vadd.xlane.f32.xlu0 %v1504
  %v1506 = vpop.xlane.xlu0 %1505
  %v1507 = vld [vmem:[#allocation2] sm:$0x1]
  %v1509 = vlaneseq
  %v1510 = vshrl.u32 %v1509, 7
  %v1511 = vsub.s32 0, %v1510
  %v1512 = vrot.slane %v1507, %v1511
  %v1514 = vadd.f32 %v1506, %v1512
  %vm1515 = vcmask 7168
  %1516 = vst.msk [vmem:[%s6] sm:$0xff] %vm1515, %v1514
  // Predicated region
  $region26: #{lstm_predictor_forward.1} parent=0 // pred_check
    _
  $region27: #{lstm_predictor_forward.1} parent=0 // pred_check_branch
    %1518 = sbr.rel (0) target = $region29
  $region28: #{lstm_predictor_forward.1} parent=0 // pred_region
    _
  $region29: #{lstm_predictor_forward.1} parent=0 // pred_fallthru
    _
  // Predicated region
  $region30: #{lstm_predictor_forward.1} parent=0 // pred_check
    _
  $region31: #{lstm_predictor_forward.1} parent=0 // pred_check_branch
    %1520 = sbr.rel (0) target = $region33
  $region32: #{lstm_predictor_forward.1} parent=0 // pred_region
    _
  $region33: #{lstm_predictor_forward.1} parent=0 // pred_fallthru
    _

</llo_original>
